<compile_context>
chip_gen: v6e
topology: v6e:2x2x1
jax: 0.10.0
libtpu: 0.0.40
codegen_flags: <defaults>
</compile_context>

<pallas_src>
import numpy as np
import jax
import jax.numpy as jnp
from jax import lax
from jax.experimental import pallas as pl
from jax.experimental.pallas import tpu as pltpu


def _round_up(x, m):
    return (x + m - 1) // m * m


# ----------------------------- kernel -----------------------------
def _make_double_conv_kernel(H, W, Cin, Cout):
    Hp, Wp = H + 2, W + 2
    S = Wp + 1                        # max |shift| of a 3x3 tap on the flat grid
    Lp = Hp * Wp                      # valid (padded-grid) conv2 output length
    Lo = _round_up(Lp, 128)           # lane-dense conv2 output length (128-aligned)
    Le = Lo + 2 * S                   # conv1 output grid (covers all conv2 taps)
    Li = _round_up(Le + 2 * S, 128)   # conv1 input buffer length (128-aligned)
    tap_offsets = tuple(kh * Wp + kw for kh in range(3) for kw in range(3))

    def kernel(mask_ref, x_ref, w1_ref, b1_ref, w2_ref, b2_ref, o_ref):
        x = x_ref[0]                                        # (2Cin, Li) bf16

        # ---- conv1: per-tap MXU accumulation (bf16 operands, f32 accumulate) ----
        off0 = tap_offsets[0]
        acc1 = jnp.dot(w1_ref[0], x[:, off0:off0 + Le],
                       preferred_element_type=jnp.float32)
        for t in range(1, 9):
            off = tap_offsets[t]
            acc1 = acc1 + jnp.dot(w1_ref[t], x[:, off:off + Le],
                                  preferred_element_type=jnp.float32)
        y1 = jnp.maximum(acc1 + b1_ref[...], 0.0)           # bias + relu (f32)
        # Re-impose conv2's zero padding (halo/slack positions) with the
        # host-precomputed mask, then drop to bf16 for the second matmul.
        y1 = (y1 * mask_ref[...]).astype(jnp.bfloat16)      # (2Cout, Le)

        # ---- conv2: same per-tap trick on the VMEM-resident activation ----
        acc2 = jnp.dot(w2_ref[0], y1[:, off0:off0 + Lo],
                       preferred_element_type=jnp.float32)
        for t in range(1, 9):
            off = tap_offsets[t]
            acc2 = acc2 + jnp.dot(w2_ref[t], y1[:, off:off + Lo],
                                  preferred_element_type=jnp.float32)
        o_ref[0] = jnp.maximum(acc2 + b2_ref[...], 0.0)     # (2Cout, Lo) lane-dense

    return kernel, (Hp, Wp, S, Lp, Lo, Le, Li)


# ------------------- packing helpers (plain JAX glue) -------------------
def _pack_weights(wr, wi):
    """(3,3,Cin,Cout) HWIO real/imag -> (9, 2Cout, 2Cin) bf16 per-tap blocks.

    Block layout per tap: [[wr, -wi], [wi, wr]] so one real matmul against the
    stacked [re; im] input rows yields the stacked [re; im] complex-conv output.
    """
    Cin, Cout = wr.shape[2], wr.shape[3]
    wr9 = jnp.transpose(wr.reshape(9, Cin, Cout), (0, 2, 1))   # (9, Cout, Cin)
    wi9 = jnp.transpose(wi.reshape(9, Cin, Cout), (0, 2, 1))
    top = jnp.concatenate([wr9, -wi9], axis=2)    # rows producing the real output
    bot = jnp.concatenate([wi9, wr9], axis=2)     # rows producing the imag output
    return jnp.concatenate([top, bot], axis=1).astype(jnp.bfloat16)


def _pack_bias(br, bi):
    return jnp.concatenate([br, bi]).reshape(-1, 1).astype(jnp.float32)  # (2Cout,1)


# ----------------------------- wrapper -----------------------------
def double_conv(xr_nchw, xi_nchw, params):
    """DoubleConv forward. Inputs/outputs are NCHW float32 (real, imag)."""
    N, Cin, H, W = xr_nchw.shape
    (wr1, wi1, br1, bi1), (wr2, wi2, br2, bi2) = params
    Cout = wr1.shape[-1]

    kernel, (Hp, Wp, S, Lp, Lo, Le, Li) = _make_double_conv_kernel(H, W, Cin, Cout)

    # Layout prep: stack re/im on channels, zero halo, flatten spatial onto the
    # lane axis, add shift slack + 128-alignment, cast operands to bf16.
    # TODO(synk): at memory-bound / UNet sizes, move this padding into the kernel
    # (DMA rows into a zero-initialized VMEM scratch) and tile the spatial dim
    # into halo-overlapped row strips on an extra grid axis (v7x VMEM budget).
    x = jnp.concatenate([xr_nchw, xi_nchw], axis=1)            # (N, 2Cin, H, W)
    x = jnp.pad(x, ((0, 0), (0, 0), (1, 1), (1, 1)))           # zero halo
    x = x.reshape(N, 2 * Cin, Lp)
    x = jnp.pad(x, ((0, 0), (0, 0), (2 * S, Li - Lp - 2 * S)))  # (N, 2Cin, Li)
    x = x.astype(jnp.bfloat16)

    # Interior mask of the conv1 output grid, hoisted out of the kernel
    # (no per-step iota / integer div-mod on the VPU).
    q = np.arange(Le)
    p = q - S
    interior = (p // Wp >= 1) & (p // Wp <= H) & (p % Wp >= 1) & (p % Wp <= W)
    mask = jnp.asarray(interior.reshape(1, Le), dtype=jnp.float32)

    w1 = _pack_weights(wr1, wi1); b1 = _pack_bias(br1, bi1)
    w2 = _pack_weights(wr2, wi2); b2 = _pack_bias(br2, bi2)

    flops = N * 2 * 9 * ((2 * Cout) * (2 * Cin) * Le + (2 * Cout) * (2 * Cout) * Lo)
    bytes_accessed = (x.size * 2 + mask.size * 4 + w1.size * 2 + w2.size * 2
                      + b1.size * 4 + b2.size * 4 + N * 2 * Cout * Lo * 4)

    out = pl.pallas_call(
        kernel,
        # Batch on a parallel grid axis: on v7x (2 TCs) each core gets one image.
        # TODO(synk): on single-TC v5e/v6e with tiny N, fold the batch onto the
        # lane axis (grid=(1,)) to shave the ~0.35us/step grid overhead.
        grid=(N,),
        in_specs=[
            pl.BlockSpec((1, Le), lambda n: (0, 0)),                   # mask
            pl.BlockSpec((1, 2 * Cin, Li), lambda n: (n, 0, 0)),       # x
            pl.BlockSpec((9, 2 * Cout, 2 * Cin), lambda n: (0, 0, 0)),  # w1
            pl.BlockSpec((2 * Cout, 1), lambda n: (0, 0)),             # b1
            pl.BlockSpec((9, 2 * Cout, 2 * Cout), lambda n: (0, 0, 0)),  # w2
            pl.BlockSpec((2 * Cout, 1), lambda n: (0, 0)),             # b2
        ],
        out_specs=pl.BlockSpec((1, 2 * Cout, Lo), lambda n: (n, 0, 0)),
        out_shape=jax.ShapeDtypeStruct((N, 2 * Cout, Lo), jnp.float32),
        compiler_params=pltpu.CompilerParams(
            dimension_semantics=("parallel",)),
        cost_estimate=pl.CostEstimate(flops=int(flops), transcendentals=0,
                                      bytes_accessed=int(bytes_accessed)),
    )(mask, x, w1, b1, w2, b2)

    # Drop lane padding + halo and split real/imag -> NCHW (no transposes).
    y = out[:, :, :Lp].reshape(N, 2 * Cout, Hp, Wp)[:, :, 1:H + 1, 1:W + 1]
    return y[:, :Cout], y[:, Cout:]


# ----------------------- pure-JAX references (for checking) -----------------------
def _bf16_round(a):
    return a.astype(jnp.bfloat16).astype(jnp.float32)


def _ref_complex_conv_relu(xr, xi, wr, wi, br, bi, quantize):
    if quantize:  # mirror the kernel's bf16-operand / f32-accumulate quantization
        xr, xi, wr, wi = map(_bf16_round, (xr, xi, wr, wi))
    dn = ("NHWC", "HWIO", "NHWC")
    conv = lambda x, w: lax.conv_general_dilated(
        x, w, window_strides=(1, 1), padding="SAME", dimension_numbers=dn,
        preferred_element_type=jnp.float32)
    yr = conv(xr, wr) - conv(xi, wi) + br[None, None, None, :]
    yi = conv(xi, wr) + conv(xr, wi) + bi[None, None, None, :]
    return jnp.maximum(yr, 0.0), jnp.maximum(yi, 0.0)


def _ref_double_conv(xr_nchw, xi_nchw, params, quantize=False):
    xr = jnp.transpose(xr_nchw, (0, 2, 3, 1))
    xi = jnp.transpose(xi_nchw, (0, 2, 3, 1))
    (wr1, wi1, br1, bi1), (wr2, wi2, br2, bi2) = params
    yr, yi = _ref_complex_conv_relu(xr, xi, wr1, wi1, br1, bi1, quantize)
    yr, yi = _ref_complex_conv_relu(yr, yi, wr2, wi2, br2, bi2, quantize)
    return jnp.transpose(yr, (0, 3, 1, 2)), jnp.transpose(yi, (0, 3, 1, 2))


def init_double_conv_params(key, in_channels, out_channels):
    """Deterministic synthetic init; shapes match ComplexConv2d(.., kernel_size=3)."""
    ks = jax.random.split(key, 8)
    scale1 = 1.0 / jnp.sqrt(in_channels * 9.0)
    scale2 = 1.0 / jnp.sqrt(out_channels * 9.0)
    wr1 = scale1 * jax.random.normal(ks[0], (3, 3, in_channels, out_channels), jnp.float32)
    wi1 = scale1 * jax.random.normal(ks[1], (3, 3, in_channels, out_channels), jnp.float32)
    br1 = 0.1 * jax.random.normal(ks[2], (out_channels,), jnp.float32)
    bi1 = 0.1 * jax.random.normal(ks[3], (out_channels,), jnp.float32)
    wr2 = scale2 * jax.random.normal(ks[4], (3, 3, out_channels, out_channels), jnp.float32)
    wi2 = scale2 * jax.random.normal(ks[5], (3, 3, out_channels, out_channels), jnp.float32)
    br2 = 0.1 * jax.random.normal(ks[6], (out_channels,), jnp.float32)
    bi2 = 0.1 * jax.random.normal(ks[7], (out_channels,), jnp.float32)
    return ((wr1, wi1, br1, bi1), (wr2, wi2, br2, bi2))


if __name__ == "__main__":
    key = jax.random.PRNGKey(0)
    k_x, k_p = jax.random.split(key)

    N, Cin, H, W = 2, 4, 16, 16
    Cout = 8

    kxr, kxi = jax.random.split(k_x)
    xr = jax.random.normal(kxr, (N, Cin, H, W), jnp.float32)  # real part (NCHW)
    xi = jax.random.normal(kxi, (N, Cin, H, W), jnp.float32)  # imag part (NCHW)

    params = init_double_conv_params(k_p, Cin, Cout)

    yr, yi = double_conv(xr, xi, params)
    jax.block_until_ready((yr, yi))
    assert yr.shape == (N, Cout, H, W) and yi.shape == (N, Cout, H, W)

    # Tight check against a reference with the SAME bf16-operand / f32-accumulate
    # quantization: proves the packing / tap indexing / fusion are exact.
    yr_q, yi_q = _ref_double_conv(xr, xi, params, quantize=True)
    assert jnp.allclose(yr, yr_q, atol=2e-3, rtol=2e-3)
    assert jnp.allclose(yi, yi_q, atol=2e-3, rtol=2e-3)

    # Sanity check against the plain f32 reference (tolerance covers the
    # review-endorsed bf16 operand quantization of the kernel).
    yr_f, yi_f = _ref_double_conv(xr, xi, params, quantize=False)
    assert jnp.allclose(yr, yr_f, atol=3e-2, rtol=3e-2)
    assert jnp.allclose(yi, yi_f, atol=3e-2, rtol=3e-2)

    print("KERNEL_OK")
</pallas_src>

<mosaic_0001>
module attributes {stable_mosaic.version = 11 : i64} {
  func.func @kernel(%arg0: i32, %arg1: memref<1x422xf32, #tpu.memory_space<vmem>>, %arg2: memref<1x8x512xbf16, #tpu.memory_space<vmem>>, %arg3: memref<9x16x8xbf16, #tpu.memory_space<vmem>>, %arg4: memref<16x1xf32, #tpu.memory_space<vmem>>, %arg5: memref<9x16x16xbf16, #tpu.memory_space<vmem>>, %arg6: memref<16x1xf32, #tpu.memory_space<vmem>>, %arg7: memref<1x16x384xf32, #tpu.memory_space<vmem>>) attributes {dimension_semantics = [#tpu.dimension_semantics<parallel>], iteration_bounds = array<i64: 2>, scalar_prefetch = 0 : i64, scratch_operands = 0 : i64, tpu.core_type = #tpu.core_type<tc>, window_params = [{pipeline_mode = #tpu.pipeline_mode<synchronous>, transform_indices = @transform_0, window_bounds = array<i64: 1, 422>}, {transform_indices = @transform_1, window_bounds = array<i64: 1, 8, 512>}, {pipeline_mode = #tpu.pipeline_mode<synchronous>, transform_indices = @transform_2, window_bounds = array<i64: 9, 16, 8>}, {pipeline_mode = #tpu.pipeline_mode<synchronous>, transform_indices = @transform_3, window_bounds = array<i64: 16, 1>}, {pipeline_mode = #tpu.pipeline_mode<synchronous>, transform_indices = @transform_4, window_bounds = array<i64: 9, 16, 16>}, {pipeline_mode = #tpu.pipeline_mode<synchronous>, transform_indices = @transform_5, window_bounds = array<i64: 16, 1>}, {transform_indices = @transform_6, window_bounds = array<i64: 1, 16, 384>}]} {
    %c0 = arith.constant 0 : index
    %c0_0 = arith.constant 0 : index
    %c0_1 = arith.constant 0 : index
    %0 = vector.load %arg2[%c0, %c0_0, %c0_1] : memref<1x8x512xbf16, #tpu.memory_space<vmem>>, vector<1x8x512xbf16>
    %1 = vector.shape_cast %0 : vector<1x8x512xbf16> to vector<8x512xbf16>
    %c0_2 = arith.constant 0 : index
    %c0_3 = arith.constant 0 : index
    %c0_4 = arith.constant 0 : index
    %2 = vector.load %arg3[%c0_2, %c0_3, %c0_4] : memref<9x16x8xbf16, #tpu.memory_space<vmem>>, vector<1x16x8xbf16>
    %3 = vector.shape_cast %2 : vector<1x16x8xbf16> to vector<16x8xbf16>
    %4 = vector.extract_strided_slice %1 {offsets = [0, 0], sizes = [8, 422], strides = [1, 1]} : vector<8x512xbf16> to vector<8x422xbf16>
    %cst = arith.constant dense<0.000000e+00> : vector<16x422xf32>
    %5 = tpu.matmul %3, %4, %cst {dimension_numbers = #tpu.dot_dimension_numbers<[1], [0], [0], [1], [0, 0, 1, 1], [], []>} : vector<16x8xbf16>, vector<8x422xbf16>, vector<16x422xf32> -> vector<16x422xf32>
    %c1 = arith.constant 1 : index
    %c0_5 = arith.constant 0 : index
    %c0_6 = arith.constant 0 : index
    %6 = vector.load %arg3[%c1, %c0_5, %c0_6] : memref<9x16x8xbf16, #tpu.memory_space<vmem>>, vector<1x16x8xbf16>
    %7 = vector.shape_cast %6 : vector<1x16x8xbf16> to vector<16x8xbf16>
    %8 = vector.extract_strided_slice %1 {offsets = [0, 1], sizes = [8, 422], strides = [1, 1]} : vector<8x512xbf16> to vector<8x422xbf16>
    %cst_7 = arith.constant dense<0.000000e+00> : vector<16x422xf32>
    %9 = tpu.matmul %7, %8, %cst_7 {dimension_numbers = #tpu.dot_dimension_numbers<[1], [0], [0], [1], [0, 0, 1, 1], [], []>} : vector<16x8xbf16>, vector<8x422xbf16>, vector<16x422xf32> -> vector<16x422xf32>
    %10 = arith.addf %5, %9 : vector<16x422xf32>
    %c2 = arith.constant 2 : index
    %c0_8 = arith.constant 0 : index
    %c0_9 = arith.constant 0 : index
    %11 = vector.load %arg3[%c2, %c0_8, %c0_9] : memref<9x16x8xbf16, #tpu.memory_space<vmem>>, vector<1x16x8xbf16>
    %12 = vector.shape_cast %11 : vector<1x16x8xbf16> to vector<16x8xbf16>
    %13 = vector.extract_strided_slice %1 {offsets = [0, 2], sizes = [8, 422], strides = [1, 1]} : vector<8x512xbf16> to vector<8x422xbf16>
    %cst_10 = arith.constant dense<0.000000e+00> : vector<16x422xf32>
    %14 = tpu.matmul %12, %13, %cst_10 {dimension_numbers = #tpu.dot_dimension_numbers<[1], [0], [0], [1], [0, 0, 1, 1], [], []>} : vector<16x8xbf16>, vector<8x422xbf16>, vector<16x422xf32> -> vector<16x422xf32>
    %15 = arith.addf %10, %14 : vector<16x422xf32>
    %c3 = arith.constant 3 : index
    %c0_11 = arith.constant 0 : index
    %c0_12 = arith.constant 0 : index
    %16 = vector.load %arg3[%c3, %c0_11, %c0_12] : memref<9x16x8xbf16, #tpu.memory_space<vmem>>, vector<1x16x8xbf16>
    %17 = vector.shape_cast %16 : vector<1x16x8xbf16> to vector<16x8xbf16>
    %18 = vector.extract_strided_slice %1 {offsets = [0, 18], sizes = [8, 422], strides = [1, 1]} : vector<8x512xbf16> to vector<8x422xbf16>
    %cst_13 = arith.constant dense<0.000000e+00> : vector<16x422xf32>
    %19 = tpu.matmul %17, %18, %cst_13 {dimension_numbers = #tpu.dot_dimension_numbers<[1], [0], [0], [1], [0, 0, 1, 1], [], []>} : vector<16x8xbf16>, vector<8x422xbf16>, vector<16x422xf32> -> vector<16x422xf32>
    %20 = arith.addf %15, %19 : vector<16x422xf32>
    %c4 = arith.constant 4 : index
    %c0_14 = arith.constant 0 : index
    %c0_15 = arith.constant 0 : index
    %21 = vector.load %arg3[%c4, %c0_14, %c0_15] : memref<9x16x8xbf16, #tpu.memory_space<vmem>>, vector<1x16x8xbf16>
    %22 = vector.shape_cast %21 : vector<1x16x8xbf16> to vector<16x8xbf16>
    %23 = vector.extract_strided_slice %1 {offsets = [0, 19], sizes = [8, 422], strides = [1, 1]} : vector<8x512xbf16> to vector<8x422xbf16>
    %cst_16 = arith.constant dense<0.000000e+00> : vector<16x422xf32>
    %24 = tpu.matmul %22, %23, %cst_16 {dimension_numbers = #tpu.dot_dimension_numbers<[1], [0], [0], [1], [0, 0, 1, 1], [], []>} : vector<16x8xbf16>, vector<8x422xbf16>, vector<16x422xf32> -> vector<16x422xf32>
    %25 = arith.addf %20, %24 : vector<16x422xf32>
    %c5 = arith.constant 5 : index
    %c0_17 = arith.constant 0 : index
    %c0_18 = arith.constant 0 : index
    %26 = vector.load %arg3[%c5, %c0_17, %c0_18] : memref<9x16x8xbf16, #tpu.memory_space<vmem>>, vector<1x16x8xbf16>
    %27 = vector.shape_cast %26 : vector<1x16x8xbf16> to vector<16x8xbf16>
    %28 = vector.extract_strided_slice %1 {offsets = [0, 20], sizes = [8, 422], strides = [1, 1]} : vector<8x512xbf16> to vector<8x422xbf16>
    %cst_19 = arith.constant dense<0.000000e+00> : vector<16x422xf32>
    %29 = tpu.matmul %27, %28, %cst_19 {dimension_numbers = #tpu.dot_dimension_numbers<[1], [0], [0], [1], [0, 0, 1, 1], [], []>} : vector<16x8xbf16>, vector<8x422xbf16>, vector<16x422xf32> -> vector<16x422xf32>
    %30 = arith.addf %25, %29 : vector<16x422xf32>
    %c6 = arith.constant 6 : index
    %c0_20 = arith.constant 0 : index
    %c0_21 = arith.constant 0 : index
    %31 = vector.load %arg3[%c6, %c0_20, %c0_21] : memref<9x16x8xbf16, #tpu.memory_space<vmem>>, vector<1x16x8xbf16>
    %32 = vector.shape_cast %31 : vector<1x16x8xbf16> to vector<16x8xbf16>
    %33 = vector.extract_strided_slice %1 {offsets = [0, 36], sizes = [8, 422], strides = [1, 1]} : vector<8x512xbf16> to vector<8x422xbf16>
    %cst_22 = arith.constant dense<0.000000e+00> : vector<16x422xf32>
    %34 = tpu.matmul %32, %33, %cst_22 {dimension_numbers = #tpu.dot_dimension_numbers<[1], [0], [0], [1], [0, 0, 1, 1], [], []>} : vector<16x8xbf16>, vector<8x422xbf16>, vector<16x422xf32> -> vector<16x422xf32>
    %35 = arith.addf %30, %34 : vector<16x422xf32>
    %c7 = arith.constant 7 : index
    %c0_23 = arith.constant 0 : index
    %c0_24 = arith.constant 0 : index
    %36 = vector.load %arg3[%c7, %c0_23, %c0_24] : memref<9x16x8xbf16, #tpu.memory_space<vmem>>, vector<1x16x8xbf16>
    %37 = vector.shape_cast %36 : vector<1x16x8xbf16> to vector<16x8xbf16>
    %38 = vector.extract_strided_slice %1 {offsets = [0, 37], sizes = [8, 422], strides = [1, 1]} : vector<8x512xbf16> to vector<8x422xbf16>
    %cst_25 = arith.constant dense<0.000000e+00> : vector<16x422xf32>
    %39 = tpu.matmul %37, %38, %cst_25 {dimension_numbers = #tpu.dot_dimension_numbers<[1], [0], [0], [1], [0, 0, 1, 1], [], []>} : vector<16x8xbf16>, vector<8x422xbf16>, vector<16x422xf32> -> vector<16x422xf32>
    %40 = arith.addf %35, %39 : vector<16x422xf32>
    %c8 = arith.constant 8 : index
    %c0_26 = arith.constant 0 : index
    %c0_27 = arith.constant 0 : index
    %41 = vector.load %arg3[%c8, %c0_26, %c0_27] : memref<9x16x8xbf16, #tpu.memory_space<vmem>>, vector<1x16x8xbf16>
    %42 = vector.shape_cast %41 : vector<1x16x8xbf16> to vector<16x8xbf16>
    %43 = vector.extract_strided_slice %1 {offsets = [0, 38], sizes = [8, 422], strides = [1, 1]} : vector<8x512xbf16> to vector<8x422xbf16>
    %cst_28 = arith.constant dense<0.000000e+00> : vector<16x422xf32>
    %44 = tpu.matmul %42, %43, %cst_28 {dimension_numbers = #tpu.dot_dimension_numbers<[1], [0], [0], [1], [0, 0, 1, 1], [], []>} : vector<16x8xbf16>, vector<8x422xbf16>, vector<16x422xf32> -> vector<16x422xf32>
    %45 = arith.addf %40, %44 : vector<16x422xf32>
    %c0_29 = arith.constant 0 : index
    %c0_30 = arith.constant 0 : index
    %46 = vector.load %arg4[%c0_29, %c0_30] : memref<16x1xf32, #tpu.memory_space<vmem>>, vector<16x1xf32>
    %47 = vector.broadcast %46 : vector<16x1xf32> to vector<16x422xf32>
    %48 = arith.addf %45, %47 : vector<16x422xf32>
    %cst_31 = arith.constant 0.000000e+00 : f32
    %49 = vector.broadcast %cst_31 : f32 to vector<16x422xf32>
    %50 = arith.maximumf %48, %49 : vector<16x422xf32>
    %c0_32 = arith.constant 0 : index
    %c0_33 = arith.constant 0 : index
    %51 = vector.load %arg1[%c0_32, %c0_33] : memref<1x422xf32, #tpu.memory_space<vmem>>, vector<1x422xf32>
    %52 = vector.broadcast %51 : vector<1x422xf32> to vector<16x422xf32>
    %53 = arith.mulf %50, %52 : vector<16x422xf32>
    %54 = arith.truncf %53 : vector<16x422xf32> to vector<16x422xbf16>
    %c0_34 = arith.constant 0 : index
    %c0_35 = arith.constant 0 : index
    %c0_36 = arith.constant 0 : index
    %55 = vector.load %arg5[%c0_34, %c0_35, %c0_36] : memref<9x16x16xbf16, #tpu.memory_space<vmem>>, vector<1x16x16xbf16>
    %56 = vector.shape_cast %55 : vector<1x16x16xbf16> to vector<16x16xbf16>
    %57 = vector.extract_strided_slice %54 {offsets = [0, 0], sizes = [16, 384], strides = [1, 1]} : vector<16x422xbf16> to vector<16x384xbf16>
    %cst_37 = arith.constant dense<0.000000e+00> : vector<16x384xf32>
    %58 = tpu.matmul %56, %57, %cst_37 {dimension_numbers = #tpu.dot_dimension_numbers<[1], [0], [0], [1], [0, 0, 1, 1], [], []>} : vector<16x16xbf16>, vector<16x384xbf16>, vector<16x384xf32> -> vector<16x384xf32>
    %c1_38 = arith.constant 1 : index
    %c0_39 = arith.constant 0 : index
    %c0_40 = arith.constant 0 : index
    %59 = vector.load %arg5[%c1_38, %c0_39, %c0_40] : memref<9x16x16xbf16, #tpu.memory_space<vmem>>, vector<1x16x16xbf16>
    %60 = vector.shape_cast %59 : vector<1x16x16xbf16> to vector<16x16xbf16>
    %61 = vector.extract_strided_slice %54 {offsets = [0, 1], sizes = [16, 384], strides = [1, 1]} : vector<16x422xbf16> to vector<16x384xbf16>
    %cst_41 = arith.constant dense<0.000000e+00> : vector<16x384xf32>
    %62 = tpu.matmul %60, %61, %cst_41 {dimension_numbers = #tpu.dot_dimension_numbers<[1], [0], [0], [1], [0, 0, 1, 1], [], []>} : vector<16x16xbf16>, vector<16x384xbf16>, vector<16x384xf32> -> vector<16x384xf32>
    %63 = arith.addf %58, %62 : vector<16x384xf32>
    %c2_42 = arith.constant 2 : index
    %c0_43 = arith.constant 0 : index
    %c0_44 = arith.constant 0 : index
    %64 = vector.load %arg5[%c2_42, %c0_43, %c0_44] : memref<9x16x16xbf16, #tpu.memory_space<vmem>>, vector<1x16x16xbf16>
    %65 = vector.shape_cast %64 : vector<1x16x16xbf16> to vector<16x16xbf16>
    %66 = vector.extract_strided_slice %54 {offsets = [0, 2], sizes = [16, 384], strides = [1, 1]} : vector<16x422xbf16> to vector<16x384xbf16>
    %cst_45 = arith.constant dense<0.000000e+00> : vector<16x384xf32>
    %67 = tpu.matmul %65, %66, %cst_45 {dimension_numbers = #tpu.dot_dimension_numbers<[1], [0], [0], [1], [0, 0, 1, 1], [], []>} : vector<16x16xbf16>, vector<16x384xbf16>, vector<16x384xf32> -> vector<16x384xf32>
    %68 = arith.addf %63, %67 : vector<16x384xf32>
    %c3_46 = arith.constant 3 : index
    %c0_47 = arith.constant 0 : index
    %c0_48 = arith.constant 0 : index
    %69 = vector.load %arg5[%c3_46, %c0_47, %c0_48] : memref<9x16x16xbf16, #tpu.memory_space<vmem>>, vector<1x16x16xbf16>
    %70 = vector.shape_cast %69 : vector<1x16x16xbf16> to vector<16x16xbf16>
    %71 = vector.extract_strided_slice %54 {offsets = [0, 18], sizes = [16, 384], strides = [1, 1]} : vector<16x422xbf16> to vector<16x384xbf16>
    %cst_49 = arith.constant dense<0.000000e+00> : vector<16x384xf32>
    %72 = tpu.matmul %70, %71, %cst_49 {dimension_numbers = #tpu.dot_dimension_numbers<[1], [0], [0], [1], [0, 0, 1, 1], [], []>} : vector<16x16xbf16>, vector<16x384xbf16>, vector<16x384xf32> -> vector<16x384xf32>
    %73 = arith.addf %68, %72 : vector<16x384xf32>
    %c4_50 = arith.constant 4 : index
    %c0_51 = arith.constant 0 : index
    %c0_52 = arith.constant 0 : index
    %74 = vector.load %arg5[%c4_50, %c0_51, %c0_52] : memref<9x16x16xbf16, #tpu.memory_space<vmem>>, vector<1x16x16xbf16>
    %75 = vector.shape_cast %74 : vector<1x16x16xbf16> to vector<16x16xbf16>
    %76 = vector.extract_strided_slice %54 {offsets = [0, 19], sizes = [16, 384], strides = [1, 1]} : vector<16x422xbf16> to vector<16x384xbf16>
    %cst_53 = arith.constant dense<0.000000e+00> : vector<16x384xf32>
    %77 = tpu.matmul %75, %76, %cst_53 {dimension_numbers = #tpu.dot_dimension_numbers<[1], [0], [0], [1], [0, 0, 1, 1], [], []>} : vector<16x16xbf16>, vector<16x384xbf16>, vector<16x384xf32> -> vector<16x384xf32>
    %78 = arith.addf %73, %77 : vector<16x384xf32>
    %c5_54 = arith.constant 5 : index
    %c0_55 = arith.constant 0 : index
    %c0_56 = arith.constant 0 : index
    %79 = vector.load %arg5[%c5_54, %c0_55, %c0_56] : memref<9x16x16xbf16, #tpu.memory_space<vmem>>, vector<1x16x16xbf16>
    %80 = vector.shape_cast %79 : vector<1x16x16xbf16> to vector<16x16xbf16>
    %81 = vector.extract_strided_slice %54 {offsets = [0, 20], sizes = [16, 384], strides = [1, 1]} : vector<16x422xbf16> to vector<16x384xbf16>
    %cst_57 = arith.constant dense<0.000000e+00> : vector<16x384xf32>
    %82 = tpu.matmul %80, %81, %cst_57 {dimension_numbers = #tpu.dot_dimension_numbers<[1], [0], [0], [1], [0, 0, 1, 1], [], []>} : vector<16x16xbf16>, vector<16x384xbf16>, vector<16x384xf32> -> vector<16x384xf32>
    %83 = arith.addf %78, %82 : vector<16x384xf32>
    %c6_58 = arith.constant 6 : index
    %c0_59 = arith.constant 0 : index
    %c0_60 = arith.constant 0 : index
    %84 = vector.load %arg5[%c6_58, %c0_59, %c0_60] : memref<9x16x16xbf16, #tpu.memory_space<vmem>>, vector<1x16x16xbf16>
    %85 = vector.shape_cast %84 : vector<1x16x16xbf16> to vector<16x16xbf16>
    %86 = vector.extract_strided_slice %54 {offsets = [0, 36], sizes = [16, 384], strides = [1, 1]} : vector<16x422xbf16> to vector<16x384xbf16>
    %cst_61 = arith.constant dense<0.000000e+00> : vector<16x384xf32>
    %87 = tpu.matmul %85, %86, %cst_61 {dimension_numbers = #tpu.dot_dimension_numbers<[1], [0], [0], [1], [0, 0, 1, 1], [], []>} : vector<16x16xbf16>, vector<16x384xbf16>, vector<16x384xf32> -> vector<16x384xf32>
    %88 = arith.addf %83, %87 : vector<16x384xf32>
    %c7_62 = arith.constant 7 : index
    %c0_63 = arith.constant 0 : index
    %c0_64 = arith.constant 0 : index
    %89 = vector.load %arg5[%c7_62, %c0_63, %c0_64] : memref<9x16x16xbf16, #tpu.memory_space<vmem>>, vector<1x16x16xbf16>
    %90 = vector.shape_cast %89 : vector<1x16x16xbf16> to vector<16x16xbf16>
    %91 = vector.extract_strided_slice %54 {offsets = [0, 37], sizes = [16, 384], strides = [1, 1]} : vector<16x422xbf16> to vector<16x384xbf16>
    %cst_65 = arith.constant dense<0.000000e+00> : vector<16x384xf32>
    %92 = tpu.matmul %90, %91, %cst_65 {dimension_numbers = #tpu.dot_dimension_numbers<[1], [0], [0], [1], [0, 0, 1, 1], [], []>} : vector<16x16xbf16>, vector<16x384xbf16>, vector<16x384xf32> -> vector<16x384xf32>
    %93 = arith.addf %88, %92 : vector<16x384xf32>
    %c8_66 = arith.constant 8 : index
    %c0_67 = arith.constant 0 : index
    %c0_68 = arith.constant 0 : index
    %94 = vector.load %arg5[%c8_66, %c0_67, %c0_68] : memref<9x16x16xbf16, #tpu.memory_space<vmem>>, vector<1x16x16xbf16>
    %95 = vector.shape_cast %94 : vector<1x16x16xbf16> to vector<16x16xbf16>
    %96 = vector.extract_strided_slice %54 {offsets = [0, 38], sizes = [16, 384], strides = [1, 1]} : vector<16x422xbf16> to vector<16x384xbf16>
    %cst_69 = arith.constant dense<0.000000e+00> : vector<16x384xf32>
    %97 = tpu.matmul %95, %96, %cst_69 {dimension_numbers = #tpu.dot_dimension_numbers<[1], [0], [0], [1], [0, 0, 1, 1], [], []>} : vector<16x16xbf16>, vector<16x384xbf16>, vector<16x384xf32> -> vector<16x384xf32>
    %98 = arith.addf %93, %97 : vector<16x384xf32>
    %c0_70 = arith.constant 0 : index
    %c0_71 = arith.constant 0 : index
    %99 = vector.load %arg6[%c0_70, %c0_71] : memref<16x1xf32, #tpu.memory_space<vmem>>, vector<16x1xf32>
    %100 = vector.broadcast %99 : vector<16x1xf32> to vector<16x384xf32>
    %101 = arith.addf %98, %100 : vector<16x384xf32>
    %cst_72 = arith.constant 0.000000e+00 : f32
    %102 = vector.broadcast %cst_72 : f32 to vector<16x384xf32>
    %103 = arith.maximumf %101, %102 : vector<16x384xf32>
    %c0_73 = arith.constant 0 : index
    %c0_74 = arith.constant 0 : index
    %c0_75 = arith.constant 0 : index
    %104 = vector.load %arg7[%c0_73, %c0_74, %c0_75] : memref<1x16x384xf32, #tpu.memory_space<vmem>>, vector<1x16x384xf32>
    %105 = vector.shape_cast %104 : vector<1x16x384xf32> to vector<16x384xf32>
    %106 = vector.shape_cast %103 : vector<16x384xf32> to vector<1x16x384xf32>
    tpu.vector_store %arg7[%c0_73, %c0_74, %c0_75], %106 {strides = array<i32>} : memref<1x16x384xf32, #tpu.memory_space<vmem>>, vector<1x16x384xf32>,
    return
  }
  func.func @transform_0(%arg0: i32) -> (i32, i32) {
    %c0_i32 = arith.constant 0 : i32
    %c0_i32_0 = arith.constant 0 : i32
    %c0_i32_1 = arith.constant 0 : i32
    return %c0_i32, %c0_i32_0 : i32, i32
  }
  func.func @transform_1(%arg0: i32) -> (i32, i32, i32) {
    %c0_i32 = arith.constant 0 : i32
    %c0_i32_0 = arith.constant 0 : i32
    %c0_i32_1 = arith.constant 0 : i32
    return %arg0, %c0_i32, %c0_i32_0 : i32, i32, i32
  }
  func.func @transform_2(%arg0: i32) -> (i32, i32, i32) {
    %c0_i32 = arith.constant 0 : i32
    %c0_i32_0 = arith.constant 0 : i32
    %c0_i32_1 = arith.constant 0 : i32
    %c0_i32_2 = arith.constant 0 : i32
    return %c0_i32, %c0_i32_0, %c0_i32_1 : i32, i32, i32
  }
  func.func @transform_3(%arg0: i32) -> (i32, i32) {
    %c0_i32 = arith.constant 0 : i32
    %c0_i32_0 = arith.constant 0 : i32
    %c0_i32_1 = arith.constant 0 : i32
    return %c0_i32, %c0_i32_0 : i32, i32
  }
  func.func @transform_4(%arg0: i32) -> (i32, i32, i32) {
    %c0_i32 = arith.constant 0 : i32
    %c0_i32_0 = arith.constant 0 : i32
    %c0_i32_1 = arith.constant 0 : i32
    %c0_i32_2 = arith.constant 0 : i32
    return %c0_i32, %c0_i32_0, %c0_i32_1 : i32, i32, i32
  }
  func.func @transform_5(%arg0: i32) -> (i32, i32) {
    %c0_i32 = arith.constant 0 : i32
    %c0_i32_0 = arith.constant 0 : i32
    %c0_i32_1 = arith.constant 0 : i32
    return %c0_i32, %c0_i32_0 : i32, i32
  }
  func.func @transform_6(%arg0: i32) -> (i32, i32, i32) {
    %c0_i32 = arith.constant 0 : i32
    %c0_i32_0 = arith.constant 0 : i32
    %c0_i32_1 = arith.constant 0 : i32
    return %arg0, %c0_i32, %c0_i32_0 : i32, i32, i32
  }
}

</mosaic_0001>

<llo_original>
// kernel: tpu_custom_call.1
$region0: #{tpu_custom_call.1}
  #allocation0 [shape = 'u32[]', space=smem, size = 0x4, offset = 0x4, fixed_abs, tag = 'smem constant byte address 0x4 - core index']
  #allocation1 [shape = 'u32[144,128]{1,0:T(1,128)}', space=vmem, size = 0x12000, scoped, tag = 'internal scratch']
  %s0 = inlined_call_operand.vmem [shape: f32[1,422], index: 0, kind: input, shape index: {}]
  %s1 = inlined_call_operand.vmem [shape: bf16[2,8,512], index: 1, kind: input, shape index: {}]
  %s2 = inlined_call_operand.vmem [shape: bf16[9,16,8], index: 2, kind: input, shape index: {}]
  %s3 = inlined_call_operand.vmem [shape: f32[16,1], index: 3, kind: input, shape index: {}]
  %s4 = inlined_call_operand.vmem [shape: bf16[9,16,16], index: 4, kind: input, shape index: {}]
  %s5 = inlined_call_operand.vmem [shape: f32[16,1], index: 5, kind: input, shape index: {}]
  %s6 = inlined_call_operand.hbm [shape: f32[2,16,384], index: 6, kind: output, shape index: {}]
  %s7 = sld [smem:[#allocation0]]
  $region57: #{tpu_custom_call.1} parent=0
    _
  %s9 = ssub.s32 1, %s7
  %s10 = scalar_select 0, %s9, %s7
  $region1: #{tpu_custom_call.1} parent=0
    #allocation2 [shape = 'u8[49152]{0}', space=vmem, size = 0xc000, scoped, tag = 'output window, operand 0']
    #allocation3 [shape = 's32[2]{0}', space=sflag, size = 0x8, scoped, tag = 'scoped memory for tpu_custom_call.1']
    %11 = vsyncpa [#allocation3], 0
    %s12 = scalar_lea.sflag [#allocation3], 1
    %13 = vsyncpa %s12, 0
    loop: start=0, step=1, limit=4
    $region2: #{tpu_custom_call.1} parent=1 // loop_pre_header
      _
    $region3: #{tpu_custom_call.1} parent=1 // loop_header
      %s15 = sphi 0, %s19
      %p16 = scmp.ge.s32.totalorder %s15, 4
      %s23 = sphi 0, %s23
      %s25 = sphi 0, %s23
      %s26 = sphi 0, %s25
      %s40 = sphi 0, %s26
      %s46 = sphi 0, %s48
      %s49 = sphi 0, %s46
      %s50 = sphi 0, %s49
      %s66 = sphi 0, %s50
      %s70 = sphi 0, %s70
      %s72 = sphi 0, %s70
      %s73 = sphi 0, %s72
      %s87 = sphi 0, %s73
      %s91 = sphi 0, %s91
      %s93 = sphi 0, %s91
      %s94 = sphi 0, %s93
      %s108 = sphi 0, %s94
      %s112 = sphi 0, %s112
      %s114 = sphi 0, %s112
      %s115 = sphi 0, %s114
      %s129 = sphi 0, %s115
      %s133 = sphi 0, %s133
      %s135 = sphi 0, %s133
      %s136 = sphi 0, %s135
      %s150 = sphi 0, %s136
      %s156 = sphi 0, %s158
      %s159 = sphi 0, %s156
      %s160 = sphi 0, %s159
      %s176 = sphi 0, %s160
    $region4: #{tpu_custom_call.1} parent=1 // loop_header_branch
      %18 = sbr.rel (%p16) target = $region8
    $region5: #{tpu_custom_call.1} parent=1 // loop_body
      %s20 = ssub.s32 %s15, 1
      %s21 = ssub.s32 %s15, 2
      %s22 = sadd.s32 %s15, 1
      %s24 = sadd.s32 %s23, 1
      %p27 = scmp.eq.s32.totalorder %s15, 1
      %p28 = scmp.ne.s32.totalorder %s23, %s25
      %p29 = scmp.eq.s32.totalorder %s15, 0
      %p30 = por %p28, %p29
      %p31 = scmp.ne.s32.totalorder %s23, %s25
      %p32 = scmp.eq.s32.totalorder %s20, 1
      %p33 = por %p31, %p32
      %p34 = scmp.ne.s32.totalorder %s25, %s26
      %p35 = scmp.eq.s32.totalorder %s20, 0
      %p36 = por %p34, %p35
      %p37 = scmp.ne.s32.totalorder %s25, %s26
      %p38 = scmp.eq.s32.totalorder %s21, 1
      %p39 = por %p37, %p38
      %p41 = scmp.ne.s32.totalorder %s26, %s40
      %p42 = scmp.eq.s32.totalorder %s21, 0
      %p43 = por %p41, %p42
      %s44 = ssub.s32 %s15, %s22
      %p45 = scmp.eq.s32.totalorder %s44, 0
      %s47 = sadd.s32 %s46, 1
      %s48 = scalar_select %p45, %s46, %s47
      %p51 = pneg %p45
      %p52 = scmp.eq.s32.totalorder %s15, 1
      %p53 = por %p51, %p52
      %p54 = scmp.ne.s32.totalorder %s46, %s49
      %p55 = scmp.eq.s32.totalorder %s15, 0
      %p56 = por %p54, %p55
      %p57 = scmp.ne.s32.totalorder %s46, %s49
      %p58 = scmp.eq.s32.totalorder %s20, 1
      %p59 = por %p57, %p58
      %p60 = scmp.ne.s32.totalorder %s49, %s50
      %p61 = scmp.eq.s32.totalorder %s20, 0
      %p62 = por %p60, %p61
      %p63 = scmp.ne.s32.totalorder %s49, %s50
      %p64 = scmp.eq.s32.totalorder %s21, 1
      %p65 = por %p63, %p64
      %p67 = scmp.ne.s32.totalorder %s50, %s66
      %p68 = scmp.eq.s32.totalorder %s21, 0
      %p69 = por %p67, %p68
      %s71 = sadd.s32 %s70, 1
      %p74 = scmp.eq.s32.totalorder %s15, 1
      %p75 = scmp.ne.s32.totalorder %s70, %s72
      %p76 = scmp.eq.s32.totalorder %s15, 0
      %p77 = por %p75, %p76
      %p78 = scmp.ne.s32.totalorder %s70, %s72
      %p79 = scmp.eq.s32.totalorder %s20, 1
      %p80 = por %p78, %p79
      %p81 = scmp.ne.s32.totalorder %s72, %s73
      %p82 = scmp.eq.s32.totalorder %s20, 0
      %p83 = por %p81, %p82
      %p84 = scmp.ne.s32.totalorder %s72, %s73
      %p85 = scmp.eq.s32.totalorder %s21, 1
      %p86 = por %p84, %p85
      %p88 = scmp.ne.s32.totalorder %s73, %s87
      %p89 = scmp.eq.s32.totalorder %s21, 0
      %p90 = por %p88, %p89
      %s92 = sadd.s32 %s91, 1
      %p95 = scmp.eq.s32.totalorder %s15, 1
      %p96 = scmp.ne.s32.totalorder %s91, %s93
      %p97 = scmp.eq.s32.totalorder %s15, 0
      %p98 = por %p96, %p97
      %p99 = scmp.ne.s32.totalorder %s91, %s93
      %p100 = scmp.eq.s32.totalorder %s20, 1
      %p101 = por %p99, %p100
      %p102 = scmp.ne.s32.totalorder %s93, %s94
      %p103 = scmp.eq.s32.totalorder %s20, 0
      %p104 = por %p102, %p103
      %p105 = scmp.ne.s32.totalorder %s93, %s94
      %p106 = scmp.eq.s32.totalorder %s21, 1
      %p107 = por %p105, %p106
      %p109 = scmp.ne.s32.totalorder %s94, %s108
      %p110 = scmp.eq.s32.totalorder %s21, 0
      %p111 = por %p109, %p110
      %s113 = sadd.s32 %s112, 1
      %p116 = scmp.eq.s32.totalorder %s15, 1
      %p117 = scmp.ne.s32.totalorder %s112, %s114
      %p118 = scmp.eq.s32.totalorder %s15, 0
      %p119 = por %p117, %p118
      %p120 = scmp.ne.s32.totalorder %s112, %s114
      %p121 = scmp.eq.s32.totalorder %s20, 1
      %p122 = por %p120, %p121
      %p123 = scmp.ne.s32.totalorder %s114, %s115
      %p124 = scmp.eq.s32.totalorder %s20, 0
      %p125 = por %p123, %p124
      %p126 = scmp.ne.s32.totalorder %s114, %s115
      %p127 = scmp.eq.s32.totalorder %s21, 1
      %p128 = por %p126, %p127
      %p130 = scmp.ne.s32.totalorder %s115, %s129
      %p131 = scmp.eq.s32.totalorder %s21, 0
      %p132 = por %p130, %p131
      %s134 = sadd.s32 %s133, 1
      %p137 = scmp.eq.s32.totalorder %s15, 1
      %p138 = scmp.ne.s32.totalorder %s133, %s135
      %p139 = scmp.eq.s32.totalorder %s15, 0
      %p140 = por %p138, %p139
      %p141 = scmp.ne.s32.totalorder %s133, %s135
      %p142 = scmp.eq.s32.totalorder %s20, 1
      %p143 = por %p141, %p142
      %p144 = scmp.ne.s32.totalorder %s135, %s136
      %p145 = scmp.eq.s32.totalorder %s20, 0
      %p146 = por %p144, %p145
      %p147 = scmp.ne.s32.totalorder %s135, %s136
      %p148 = scmp.eq.s32.totalorder %s21, 1
      %p149 = por %p147, %p148
      %p151 = scmp.ne.s32.totalorder %s136, %s150
      %p152 = scmp.eq.s32.totalorder %s21, 0
      %p153 = por %p151, %p152
      %s154 = ssub.s32 %s15, %s22
      %p155 = scmp.eq.s32.totalorder %s154, 0
      %s157 = sadd.s32 %s156, 1
      %s158 = scalar_select %p155, %s156, %s157
      %p161 = pneg %p155
      %p162 = scmp.eq.s32.totalorder %s15, 1
      %p163 = por %p161, %p162
      %p164 = scmp.ne.s32.totalorder %s156, %s159
      %p165 = scmp.eq.s32.totalorder %s15, 0
      %p166 = por %p164, %p165
      %p167 = scmp.ne.s32.totalorder %s156, %s159
      %p168 = scmp.eq.s32.totalorder %s20, 1
      %p169 = por %p167, %p168
      %p170 = scmp.ne.s32.totalorder %s159, %s160
      %p171 = scmp.eq.s32.totalorder %s20, 0
      %p172 = por %p170, %p171
      %p173 = scmp.ne.s32.totalorder %s159, %s160
      %p174 = scmp.eq.s32.totalorder %s21, 1
      %p175 = por %p173, %p174
      %p177 = scmp.ne.s32.totalorder %s160, %s176
      %p178 = scmp.eq.s32.totalorder %s21, 0
      %p179 = por %p177, %p178
      %p180 = scmp.le.s32.totalorder 1, %s15
      %p181 = scmp.lt.s32.totalorder %s15, 3
      %p182 = pnand %p180, %p181
      %p183 = pneg %p182
      // Predicated region
      $region9: #{tpu_custom_call.1} parent=5 // pred_check
        _
      $region10: #{tpu_custom_call.1} parent=5 // pred_check_branch
        %185 = sbr.rel (%p182) target = $region12
      $region11: #{tpu_custom_call.1} parent=5 // pred_region
        %s186 = ssub.s32 %s15, 1
        // Predicated region
        $region13: #{tpu_custom_call.1} parent=11 // pred_check
          %p187 = pneg %p36
        $region14: #{tpu_custom_call.1} parent=11 // pred_check_branch
          %189 = sbr.rel (%p187) target = $region16
        $region15: #{tpu_custom_call.1} parent=11 // pred_region
          _
        $region16: #{tpu_custom_call.1} parent=11 // pred_fallthru
          _
        // Predicated region
        $region17: #{tpu_custom_call.1} parent=11 // pred_check
          %p190 = pneg %p83
        $region18: #{tpu_custom_call.1} parent=11 // pred_check_branch
          %192 = sbr.rel (%p190) target = $region20
        $region19: #{tpu_custom_call.1} parent=11 // pred_region
          _
        $region20: #{tpu_custom_call.1} parent=11 // pred_fallthru
          _
        // Predicated region
        $region21: #{tpu_custom_call.1} parent=11 // pred_check
          %p193 = pneg %p104
        $region22: #{tpu_custom_call.1} parent=11 // pred_check_branch
          %195 = sbr.rel (%p193) target = $region24
        $region23: #{tpu_custom_call.1} parent=11 // pred_region
          _
        $region24: #{tpu_custom_call.1} parent=11 // pred_fallthru
          _
        // Predicated region
        $region25: #{tpu_custom_call.1} parent=11 // pred_check
          %p196 = pneg %p125
        $region26: #{tpu_custom_call.1} parent=11 // pred_check_branch
          %198 = sbr.rel (%p196) target = $region28
        $region27: #{tpu_custom_call.1} parent=11 // pred_region
          _
        $region28: #{tpu_custom_call.1} parent=11 // pred_fallthru
          _
        // Predicated region
        $region29: #{tpu_custom_call.1} parent=11 // pred_check
          %p199 = pneg %p146
        $region30: #{tpu_custom_call.1} parent=11 // pred_check_branch
          %201 = sbr.rel (%p199) target = $region32
        $region31: #{tpu_custom_call.1} parent=11 // pred_region
          _
        $region32: #{tpu_custom_call.1} parent=11 // pred_fallthru
          _
      $region12: #{tpu_custom_call.1} parent=5 // pred_fallthru
        _
      %p202 = scmp.lt.s32.totalorder %s15, 2
      // Predicated region
      $region33: #{tpu_custom_call.1} parent=5 // pred_check
        %p203 = pneg %p202
      $region34: #{tpu_custom_call.1} parent=5 // pred_check_branch
        %205 = sbr.rel (%p203) target = $region36
      $region35: #{tpu_custom_call.1} parent=5 // pred_region
        // Predicated region
        $region37: #{tpu_custom_call.1} parent=35 // pred_check
          %p206 = pneg %p56
        $region38: #{tpu_custom_call.1} parent=35 // pred_check_branch
          %208 = sbr.rel (%p206) target = $region40
        $region39: #{tpu_custom_call.1} parent=35 // pred_region
          %p209 = scmp.lt.s32.totalorder %s15, 1
          %s210 = scalar_select %p209, %s15, 1
          %s211 = smul.addr %s210, 4
          %s212 = smul.addr %s211, 4
          %s213 = scalar_lea.vmem %s1, %s212
        $region40: #{tpu_custom_call.1} parent=35 // pred_fallthru
          _
      $region36: #{tpu_custom_call.1} parent=5 // pred_fallthru
        _
      %p214 = scmp.le.s32.totalorder 1, %s15
      %p215 = scmp.lt.s32.totalorder %s15, 3
      %p216 = pnand %p214, %p215
      %p217 = pneg %p216
      // Predicated region
      $region41: #{tpu_custom_call.1} parent=5 // pred_check
        _
      $region42: #{tpu_custom_call.1} parent=5 // pred_check_branch
        %219 = sbr.rel (%p216) target = $region44
      $region43: #{tpu_custom_call.1} parent=5 // pred_region
        %s220 = ssub.s32 %s15, 1
        %p221 = pneg %p36
        %p222 = pneg %p33
        %p223 = scmp.lt.s32.totalorder %s20, 1
        %s224 = scalar_select %p223, %s20, 1
        %s225 = smul.addr %s224, 4
        %s226 = smul.addr %s225, 4
        %s227 = scalar_lea.vmem %s1, %s226
        %p228 = pneg %p62
        %p229 = pneg %p59
        %p230 = pneg %p83
        %p231 = pneg %p80
        %p232 = pneg %p104
        %p233 = pneg %p101
        %p234 = pneg %p125
        %p235 = pneg %p122
        %p236 = pneg %p146
        %p237 = pneg %p143
        %p238 = pneg %p172
        %p239 = pneg %p169
        %s240 = sand.u32 %s159, 1
        %s241 = scalar_lea.sflag [#allocation3], %s240
        %s242 = sand.u32 %s159, 1
        %s243 = smul.addr %s242, 48
        %s244 = scalar_lea.vmem [#allocation2], %s243
        %p245 = scmp.lt.s32.totalorder %s20, 1
        %s246 = scalar_select %p245, %s20, 1
        %s247 = smul.addr %s246, 4
        %s248 = smul.addr %s247, 4
        %s249 = scalar_lea.vmem %s1, %s248
        %v251 = vld [vmem:[%s249] sm:$0xff]
        %v252 = vld [vmem:[%s249 + $0x8] sm:$0xff]
        %v253 = vld [vmem:[%s2] sm:$0xf]
        %v254 = vld [vmem:[%s2 + $0x4] sm:$0xf]
        %s255 = scalar_lea.vmem %s2, 8
        %v256 = vld [vmem:[%s255] sm:$0xf]
        %v257 = vld [vmem:[%s255 + $0x4] sm:$0xf]
        %v260 = vunpack.c.l.b16 %v256
        %v261 = vunpack.c.l.b16 %v257
        %v262 = vpack.c.b16 %v261, %v260
        %v265 = vunpack.c.l.b16 %v251
        %v266 = vunpack.c.h.b16 %v251
        %v267 = vunpack.c.l.b16 %v252
        %v268 = vunpack.c.h.b16 %v252
        %v269 = vpack.c.b16 %v265, %v265
        %v270 = vpack.c.b16 %v266, %v266
        %v271 = vpack.c.b16 %v267, %v267
        %v272 = vpack.c.b16 %v268, %v268
        %273 = vrot.lane.b32.xlu0 %v269, 127
        %v274 = vpop.permute.xlu0 %273
        %275 = vrot.lane.b32.xlu0 %v270, 127
        %v276 = vpop.permute.xlu0 %275
        %277 = vrot.lane.b32.xlu0 %v271, 127
        %v278 = vpop.permute.xlu0 %277
        %279 = vrot.lane.b32.xlu0 %v272, 127
        %v280 = vpop.permute.xlu0 %279
        %vm281 = vcmask 1039360
        %v282 = vsel %vm281, %v274, %v276
        %v283 = vsel %vm281, %v276, %v278
        %v284 = vsel %vm281, %v278, %v280
        %vm285 = vcmask 64512
        %v287 = vsel %vm285, %v262, 0
        %vm289 = vcmask 1043456
        %v291 = vsel %vm289, %v282, 0
        %v294 = vsel %vm289, %v283, 0
        %v297 = vsel %vm289, %v284, 0
        %v300 = vsel %vm289, %v280, 0
        %302 = vmatprep.subr.bf16.mxu0 0
        %303 = vmatpush1.bf16.msra.mxu0 0
        %304 = vmatprep.subr.bf16.mxu0 0
        %305 = vmatpush1.bf16.msra.mxu0 0
        %306 = vmatprep.subr.bf16.mxu0 0
        %307 = vmatpush1.bf16.msra.mxu0 0
        %308 = vmatprep.subr.bf16.mxu0 0
        %309 = vmatpush1.bf16.msra.mxu0 0
        %310 = vmatprep.subr.bf16.mxu0 0
        %311 = vmatpush1.bf16.msra.mxu0 0
        %312 = vmatprep.subr.bf16.mxu0 0
        %313 = vmatpush1.bf16.msra.mxu0 0
        %314 = vmatprep.subr.bf16.mxu0 0
        %315 = vmatpush1.bf16.msra.mxu0 0
        %316 = vmatprep.subr.bf16.mxu0 %v294
        %317 = vmatpush1.bf16.msra.mxu0 %v291
        %318 = vmatprep.subr.bf16.mxu0 0
        %319 = vmatpush2.bf16.msra.mxu0 0
        %320 = vmatprep.subr.bf16.mxu0 0
        %321 = vmatpush2.bf16.msra.mxu0 0
        %322 = vmatprep.subr.bf16.mxu0 0
        %323 = vmatpush2.bf16.msra.mxu0 0
        %324 = vmatprep.subr.bf16.mxu0 0
        %325 = vmatpush2.bf16.msra.mxu0 0
        %326 = vmatprep.subr.bf16.mxu0 0
        %327 = vmatpush2.bf16.msra.mxu0 0
        %328 = vmatprep.subr.bf16.mxu0 0
        %329 = vmatpush2.bf16.msra.mxu0 0
        %330 = vmatprep.subr.bf16.mxu0 0
        %331 = vmatpush2.bf16.msra.mxu0 0
        %332 = vmatprep.subr.bf16.mxu0 0
        %333 = vmatpush2.bf16.msra.mxu0 0
        %334 = vmatprep.mubr.bf16.mxu0 0
        %335 = vmatmul.mubr.bf16.gmra.mxu0 %v287
        %v336 = vpop.f32.mrf.mxu0
        %v337 = vadd.f32 0.0, %v336
        %v338 = vpop.f32.mrf.mxu0
        %v339 = vadd.f32 0.0, %v338
        %v340 = vpop.f32.mrf.mxu0
        %v341 = vadd.f32 0.0, %v340
        %v342 = vpop.f32.mrf.mxu0
        %v343 = vadd.f32 0.0, %v342
        %344 = vdwg.mxu0
        %345 = vmatprep.subr.bf16.mxu0 0
        %346 = vmatpush1.bf16.msra.mxu0 0
        %347 = vmatprep.subr.bf16.mxu0 0
        %348 = vmatpush1.bf16.msra.mxu0 0
        %349 = vmatprep.subr.bf16.mxu0 0
        %350 = vmatpush1.bf16.msra.mxu0 0
        %351 = vmatprep.subr.bf16.mxu0 0
        %352 = vmatpush1.bf16.msra.mxu0 0
        %353 = vmatprep.subr.bf16.mxu0 0
        %354 = vmatpush1.bf16.msra.mxu0 0
        %355 = vmatprep.subr.bf16.mxu0 0
        %356 = vmatpush1.bf16.msra.mxu0 0
        %357 = vmatprep.subr.bf16.mxu0 0
        %358 = vmatpush1.bf16.msra.mxu0 0
        %359 = vmatprep.subr.bf16.mxu0 %v300
        %360 = vmatpush1.bf16.msra.mxu0 %v297
        %361 = vmatprep.subr.bf16.mxu0 0
        %362 = vmatpush2.bf16.msra.mxu0 0
        %363 = vmatprep.subr.bf16.mxu0 0
        %364 = vmatpush2.bf16.msra.mxu0 0
        %365 = vmatprep.subr.bf16.mxu0 0
        %366 = vmatpush2.bf16.msra.mxu0 0
        %367 = vmatprep.subr.bf16.mxu0 0
        %368 = vmatpush2.bf16.msra.mxu0 0
        %369 = vmatprep.subr.bf16.mxu0 0
        %370 = vmatpush2.bf16.msra.mxu0 0
        %371 = vmatprep.subr.bf16.mxu0 0
        %372 = vmatpush2.bf16.msra.mxu0 0
        %373 = vmatprep.subr.bf16.mxu0 0
        %374 = vmatpush2.bf16.msra.mxu0 0
        %375 = vmatprep.subr.bf16.mxu0 0
        %376 = vmatpush2.bf16.msra.mxu0 0
        %377 = vmatprep.mubr.bf16.mxu0 0
        %378 = vmatmul.mubr.bf16.gmra.mxu0 %v287
        %v379 = vpop.f32.mrf.mxu0
        %v380 = vadd.f32 0.0, %v379
        %v381 = vpop.f32.mrf.mxu0
        %v382 = vadd.f32 0.0, %v381
        %v383 = vpop.f32.mrf.mxu0
        %v384 = vadd.f32 0.0, %v383
        %v385 = vpop.f32.mrf.mxu0
        %v386 = vadd.f32 0.0, %v385
        %387 = vdwg.mxu0
        %v390 = vunpack.c.l.b16 %v253
        %v391 = vunpack.c.l.b16 %v254
        %v392 = vpack.c.b16 %v391, %v390
        %v394 = vsel %vm285, %v392, 0
        %v397 = vsel %vm289, %v269, 0
        %v400 = vsel %vm289, %v270, 0
        %v403 = vsel %vm289, %v271, 0
        %v406 = vsel %vm289, %v272, 0
        %408 = vmatprep.subr.bf16.mxu0 0
        %409 = vmatpush1.bf16.msra.mxu0 0
        %410 = vmatprep.subr.bf16.mxu0 0
        %411 = vmatpush1.bf16.msra.mxu0 0
        %412 = vmatprep.subr.bf16.mxu0 0
        %413 = vmatpush1.bf16.msra.mxu0 0
        %414 = vmatprep.subr.bf16.mxu0 0
        %415 = vmatpush1.bf16.msra.mxu0 0
        %416 = vmatprep.subr.bf16.mxu0 0
        %417 = vmatpush1.bf16.msra.mxu0 0
        %418 = vmatprep.subr.bf16.mxu0 0
        %419 = vmatpush1.bf16.msra.mxu0 0
        %420 = vmatprep.subr.bf16.mxu0 0
        %421 = vmatpush1.bf16.msra.mxu0 0
        %422 = vmatprep.subr.bf16.mxu0 %v400
        %423 = vmatpush1.bf16.msra.mxu0 %v397
        %424 = vmatprep.subr.bf16.mxu0 0
        %425 = vmatpush2.bf16.msra.mxu0 0
        %426 = vmatprep.subr.bf16.mxu0 0
        %427 = vmatpush2.bf16.msra.mxu0 0
        %428 = vmatprep.subr.bf16.mxu0 0
        %429 = vmatpush2.bf16.msra.mxu0 0
        %430 = vmatprep.subr.bf16.mxu0 0
        %431 = vmatpush2.bf16.msra.mxu0 0
        %432 = vmatprep.subr.bf16.mxu0 0
        %433 = vmatpush2.bf16.msra.mxu0 0
        %434 = vmatprep.subr.bf16.mxu0 0
        %435 = vmatpush2.bf16.msra.mxu0 0
        %436 = vmatprep.subr.bf16.mxu0 0
        %437 = vmatpush2.bf16.msra.mxu0 0
        %438 = vmatprep.subr.bf16.mxu0 0
        %439 = vmatpush2.bf16.msra.mxu0 0
        %440 = vmatprep.mubr.bf16.mxu0 0
        %441 = vmatmul.mubr.bf16.gmra.mxu0 %v394
        %v442 = vpop.f32.mrf.mxu0
        %v443 = vadd.f32 %v337, %v442
        %v444 = vpop.f32.mrf.mxu0
        %v445 = vadd.f32 %v339, %v444
        %v446 = vpop.f32.mrf.mxu0
        %v447 = vadd.f32 %v341, %v446
        %v448 = vpop.f32.mrf.mxu0
        %v449 = vadd.f32 %v343, %v448
        %450 = vdwg.mxu0
        %451 = vmatprep.subr.bf16.mxu0 0
        %452 = vmatpush1.bf16.msra.mxu0 0
        %453 = vmatprep.subr.bf16.mxu0 0
        %454 = vmatpush1.bf16.msra.mxu0 0
        %455 = vmatprep.subr.bf16.mxu0 0
        %456 = vmatpush1.bf16.msra.mxu0 0
        %457 = vmatprep.subr.bf16.mxu0 0
        %458 = vmatpush1.bf16.msra.mxu0 0
        %459 = vmatprep.subr.bf16.mxu0 0
        %460 = vmatpush1.bf16.msra.mxu0 0
        %461 = vmatprep.subr.bf16.mxu0 0
        %462 = vmatpush1.bf16.msra.mxu0 0
        %463 = vmatprep.subr.bf16.mxu0 0
        %464 = vmatpush1.bf16.msra.mxu0 0
        %465 = vmatprep.subr.bf16.mxu0 %v406
        %466 = vmatpush1.bf16.msra.mxu0 %v403
        %467 = vmatprep.subr.bf16.mxu0 0
        %468 = vmatpush2.bf16.msra.mxu0 0
        %469 = vmatprep.subr.bf16.mxu0 0
        %470 = vmatpush2.bf16.msra.mxu0 0
        %471 = vmatprep.subr.bf16.mxu0 0
        %472 = vmatpush2.bf16.msra.mxu0 0
        %473 = vmatprep.subr.bf16.mxu0 0
        %474 = vmatpush2.bf16.msra.mxu0 0
        %475 = vmatprep.subr.bf16.mxu0 0
        %476 = vmatpush2.bf16.msra.mxu0 0
        %477 = vmatprep.subr.bf16.mxu0 0
        %478 = vmatpush2.bf16.msra.mxu0 0
        %479 = vmatprep.subr.bf16.mxu0 0
        %480 = vmatpush2.bf16.msra.mxu0 0
        %481 = vmatprep.subr.bf16.mxu0 0
        %482 = vmatpush2.bf16.msra.mxu0 0
        %483 = vmatprep.mubr.bf16.mxu0 0
        %484 = vmatmul.mubr.bf16.gmra.mxu0 %v394
        %v485 = vpop.f32.mrf.mxu0
        %v486 = vadd.f32 %v380, %v485
        %v487 = vpop.f32.mrf.mxu0
        %v488 = vadd.f32 %v382, %v487
        %v489 = vpop.f32.mrf.mxu0
        %v490 = vadd.f32 %v384, %v489
        %v491 = vpop.f32.mrf.mxu0
        %v492 = vadd.f32 %v386, %v491
        %493 = vdwg.mxu0
        %s494 = scalar_lea.vmem %s2, 16
        %v495 = vld [vmem:[%s494] sm:$0xf]
        %v496 = vld [vmem:[%s494 + $0x4] sm:$0xf]
        %v499 = vunpack.c.l.b16 %v495
        %v500 = vunpack.c.l.b16 %v496
        %v501 = vpack.c.b16 %v500, %v499
        %502 = vrot.lane.b32.xlu0 %v269, 126
        %v503 = vpop.permute.xlu0 %502
        %504 = vrot.lane.b32.xlu0 %v270, 126
        %v505 = vpop.permute.xlu0 %504
        %506 = vrot.lane.b32.xlu0 %v271, 126
        %v507 = vpop.permute.xlu0 %506
        %508 = vrot.lane.b32.xlu0 %v272, 126
        %v509 = vpop.permute.xlu0 %508
        %vm510 = vcmask 1031168
        %v511 = vsel %vm510, %v503, %v505
        %v512 = vsel %vm510, %v505, %v507
        %v513 = vsel %vm510, %v507, %v509
        %v515 = vsel %vm285, %v501, 0
        %v518 = vsel %vm289, %v511, 0
        %v521 = vsel %vm289, %v512, 0
        %v524 = vsel %vm289, %v513, 0
        %v527 = vsel %vm289, %v509, 0
        %529 = vmatprep.subr.bf16.mxu0 0
        %530 = vmatpush1.bf16.msra.mxu0 0
        %531 = vmatprep.subr.bf16.mxu0 0
        %532 = vmatpush1.bf16.msra.mxu0 0
        %533 = vmatprep.subr.bf16.mxu0 0
        %534 = vmatpush1.bf16.msra.mxu0 0
        %535 = vmatprep.subr.bf16.mxu0 0
        %536 = vmatpush1.bf16.msra.mxu0 0
        %537 = vmatprep.subr.bf16.mxu0 0
        %538 = vmatpush1.bf16.msra.mxu0 0
        %539 = vmatprep.subr.bf16.mxu0 0
        %540 = vmatpush1.bf16.msra.mxu0 0
        %541 = vmatprep.subr.bf16.mxu0 0
        %542 = vmatpush1.bf16.msra.mxu0 0
        %543 = vmatprep.subr.bf16.mxu0 %v521
        %544 = vmatpush1.bf16.msra.mxu0 %v518
        %545 = vmatprep.subr.bf16.mxu0 0
        %546 = vmatpush2.bf16.msra.mxu0 0
        %547 = vmatprep.subr.bf16.mxu0 0
        %548 = vmatpush2.bf16.msra.mxu0 0
        %549 = vmatprep.subr.bf16.mxu0 0
        %550 = vmatpush2.bf16.msra.mxu0 0
        %551 = vmatprep.subr.bf16.mxu0 0
        %552 = vmatpush2.bf16.msra.mxu0 0
        %553 = vmatprep.subr.bf16.mxu0 0
        %554 = vmatpush2.bf16.msra.mxu0 0
        %555 = vmatprep.subr.bf16.mxu0 0
        %556 = vmatpush2.bf16.msra.mxu0 0
        %557 = vmatprep.subr.bf16.mxu0 0
        %558 = vmatpush2.bf16.msra.mxu0 0
        %559 = vmatprep.subr.bf16.mxu0 0
        %560 = vmatpush2.bf16.msra.mxu0 0
        %561 = vmatprep.mubr.bf16.mxu0 0
        %562 = vmatmul.mubr.bf16.gmra.mxu0 %v515
        %v563 = vpop.f32.mrf.mxu0
        %v564 = vadd.f32 0.0, %v563
        %v565 = vpop.f32.mrf.mxu0
        %v566 = vadd.f32 0.0, %v565
        %v567 = vpop.f32.mrf.mxu0
        %v568 = vadd.f32 0.0, %v567
        %v569 = vpop.f32.mrf.mxu0
        %v570 = vadd.f32 0.0, %v569
        %571 = vdwg.mxu0
        %572 = vmatprep.subr.bf16.mxu0 0
        %573 = vmatpush1.bf16.msra.mxu0 0
        %574 = vmatprep.subr.bf16.mxu0 0
        %575 = vmatpush1.bf16.msra.mxu0 0
        %576 = vmatprep.subr.bf16.mxu0 0
        %577 = vmatpush1.bf16.msra.mxu0 0
        %578 = vmatprep.subr.bf16.mxu0 0
        %579 = vmatpush1.bf16.msra.mxu0 0
        %580 = vmatprep.subr.bf16.mxu0 0
        %581 = vmatpush1.bf16.msra.mxu0 0
        %582 = vmatprep.subr.bf16.mxu0 0
        %583 = vmatpush1.bf16.msra.mxu0 0
        %584 = vmatprep.subr.bf16.mxu0 0
        %585 = vmatpush1.bf16.msra.mxu0 0
        %586 = vmatprep.subr.bf16.mxu0 %v527
        %587 = vmatpush1.bf16.msra.mxu0 %v524
        %588 = vmatprep.subr.bf16.mxu0 0
        %589 = vmatpush2.bf16.msra.mxu0 0
        %590 = vmatprep.subr.bf16.mxu0 0
        %591 = vmatpush2.bf16.msra.mxu0 0
        %592 = vmatprep.subr.bf16.mxu0 0
        %593 = vmatpush2.bf16.msra.mxu0 0
        %594 = vmatprep.subr.bf16.mxu0 0
        %595 = vmatpush2.bf16.msra.mxu0 0
        %596 = vmatprep.subr.bf16.mxu0 0
        %597 = vmatpush2.bf16.msra.mxu0 0
        %598 = vmatprep.subr.bf16.mxu0 0
        %599 = vmatpush2.bf16.msra.mxu0 0
        %600 = vmatprep.subr.bf16.mxu0 0
        %601 = vmatpush2.bf16.msra.mxu0 0
        %602 = vmatprep.subr.bf16.mxu0 0
        %603 = vmatpush2.bf16.msra.mxu0 0
        %604 = vmatprep.mubr.bf16.mxu0 0
        %605 = vmatmul.mubr.bf16.gmra.mxu0 %v515
        %v606 = vpop.f32.mrf.mxu0
        %v607 = vadd.f32 0.0, %v606
        %v608 = vpop.f32.mrf.mxu0
        %v609 = vadd.f32 0.0, %v608
        %v610 = vpop.f32.mrf.mxu0
        %v611 = vadd.f32 0.0, %v610
        %v612 = vpop.f32.mrf.mxu0
        %v613 = vadd.f32 0.0, %v612
        %614 = vdwg.mxu0
        %v615 = vadd.f32 %v443, %v564
        %v616 = vadd.f32 %v445, %v566
        %v617 = vadd.f32 %v486, %v607
        %v618 = vadd.f32 %v488, %v609
        %v619 = vadd.f32 %v447, %v568
        %v620 = vadd.f32 %v449, %v570
        %v621 = vadd.f32 %v490, %v611
        %v622 = vadd.f32 %v492, %v613
        %s623 = scalar_lea.vmem %s2, 24
        %v624 = vld [vmem:[%s623] sm:$0xf]
        %v625 = vld [vmem:[%s623 + $0x4] sm:$0xf]
        %v628 = vunpack.c.l.b16 %v624
        %v629 = vunpack.c.l.b16 %v625
        %v630 = vpack.c.b16 %v629, %v628
        %631 = vrot.lane.b32.xlu0 %v269, 110
        %v632 = vpop.permute.xlu0 %631
        %633 = vrot.lane.b32.xlu0 %v270, 110
        %v634 = vpop.permute.xlu0 %633
        %635 = vrot.lane.b32.xlu0 %v271, 110
        %v636 = vpop.permute.xlu0 %635
        %637 = vrot.lane.b32.xlu0 %v272, 110
        %v638 = vpop.permute.xlu0 %637
        %vm639 = vcmask 900096
        %v640 = vsel %vm639, %v632, %v634
        %v641 = vsel %vm639, %v634, %v636
        %v642 = vsel %vm639, %v636, %v638
        %v644 = vsel %vm285, %v630, 0
        %v647 = vsel %vm289, %v640, 0
        %v650 = vsel %vm289, %v641, 0
        %v653 = vsel %vm289, %v642, 0
        %v656 = vsel %vm289, %v638, 0
        %658 = vmatprep.subr.bf16.mxu0 0
        %659 = vmatpush1.bf16.msra.mxu0 0
        %660 = vmatprep.subr.bf16.mxu0 0
        %661 = vmatpush1.bf16.msra.mxu0 0
        %662 = vmatprep.subr.bf16.mxu0 0
        %663 = vmatpush1.bf16.msra.mxu0 0
        %664 = vmatprep.subr.bf16.mxu0 0
        %665 = vmatpush1.bf16.msra.mxu0 0
        %666 = vmatprep.subr.bf16.mxu0 0
        %667 = vmatpush1.bf16.msra.mxu0 0
        %668 = vmatprep.subr.bf16.mxu0 0
        %669 = vmatpush1.bf16.msra.mxu0 0
        %670 = vmatprep.subr.bf16.mxu0 0
        %671 = vmatpush1.bf16.msra.mxu0 0
        %672 = vmatprep.subr.bf16.mxu0 %v650
        %673 = vmatpush1.bf16.msra.mxu0 %v647
        %674 = vmatprep.subr.bf16.mxu0 0
        %675 = vmatpush2.bf16.msra.mxu0 0
        %676 = vmatprep.subr.bf16.mxu0 0
        %677 = vmatpush2.bf16.msra.mxu0 0
        %678 = vmatprep.subr.bf16.mxu0 0
        %679 = vmatpush2.bf16.msra.mxu0 0
        %680 = vmatprep.subr.bf16.mxu0 0
        %681 = vmatpush2.bf16.msra.mxu0 0
        %682 = vmatprep.subr.bf16.mxu0 0
        %683 = vmatpush2.bf16.msra.mxu0 0
        %684 = vmatprep.subr.bf16.mxu0 0
        %685 = vmatpush2.bf16.msra.mxu0 0
        %686 = vmatprep.subr.bf16.mxu0 0
        %687 = vmatpush2.bf16.msra.mxu0 0
        %688 = vmatprep.subr.bf16.mxu0 0
        %689 = vmatpush2.bf16.msra.mxu0 0
        %690 = vmatprep.mubr.bf16.mxu0 0
        %691 = vmatmul.mubr.bf16.gmra.mxu0 %v644
        %v692 = vpop.f32.mrf.mxu0
        %v693 = vadd.f32 0.0, %v692
        %v694 = vpop.f32.mrf.mxu0
        %v695 = vadd.f32 0.0, %v694
        %v696 = vpop.f32.mrf.mxu0
        %v697 = vadd.f32 0.0, %v696
        %v698 = vpop.f32.mrf.mxu0
        %v699 = vadd.f32 0.0, %v698
        %700 = vdwg.mxu0
        %701 = vmatprep.subr.bf16.mxu0 0
        %702 = vmatpush1.bf16.msra.mxu0 0
        %703 = vmatprep.subr.bf16.mxu0 0
        %704 = vmatpush1.bf16.msra.mxu0 0
        %705 = vmatprep.subr.bf16.mxu0 0
        %706 = vmatpush1.bf16.msra.mxu0 0
        %707 = vmatprep.subr.bf16.mxu0 0
        %708 = vmatpush1.bf16.msra.mxu0 0
        %709 = vmatprep.subr.bf16.mxu0 0
        %710 = vmatpush1.bf16.msra.mxu0 0
        %711 = vmatprep.subr.bf16.mxu0 0
        %712 = vmatpush1.bf16.msra.mxu0 0
        %713 = vmatprep.subr.bf16.mxu0 0
        %714 = vmatpush1.bf16.msra.mxu0 0
        %715 = vmatprep.subr.bf16.mxu0 %v656
        %716 = vmatpush1.bf16.msra.mxu0 %v653
        %717 = vmatprep.subr.bf16.mxu0 0
        %718 = vmatpush2.bf16.msra.mxu0 0
        %719 = vmatprep.subr.bf16.mxu0 0
        %720 = vmatpush2.bf16.msra.mxu0 0
        %721 = vmatprep.subr.bf16.mxu0 0
        %722 = vmatpush2.bf16.msra.mxu0 0
        %723 = vmatprep.subr.bf16.mxu0 0
        %724 = vmatpush2.bf16.msra.mxu0 0
        %725 = vmatprep.subr.bf16.mxu0 0
        %726 = vmatpush2.bf16.msra.mxu0 0
        %727 = vmatprep.subr.bf16.mxu0 0
        %728 = vmatpush2.bf16.msra.mxu0 0
        %729 = vmatprep.subr.bf16.mxu0 0
        %730 = vmatpush2.bf16.msra.mxu0 0
        %731 = vmatprep.subr.bf16.mxu0 0
        %732 = vmatpush2.bf16.msra.mxu0 0
        %733 = vmatprep.mubr.bf16.mxu0 0
        %734 = vmatmul.mubr.bf16.gmra.mxu0 %v644
        %v735 = vpop.f32.mrf.mxu0
        %v736 = vadd.f32 0.0, %v735
        %v737 = vpop.f32.mrf.mxu0
        %v738 = vadd.f32 0.0, %v737
        %v739 = vpop.f32.mrf.mxu0
        %v740 = vadd.f32 0.0, %v739
        %v741 = vpop.f32.mrf.mxu0
        %v742 = vadd.f32 0.0, %v741
        %743 = vdwg.mxu0
        %v744 = vadd.f32 %v615, %v693
        %v745 = vadd.f32 %v616, %v695
        %v746 = vadd.f32 %v617, %v736
        %v747 = vadd.f32 %v618, %v738
        %v748 = vadd.f32 %v619, %v697
        %v749 = vadd.f32 %v620, %v699
        %v750 = vadd.f32 %v621, %v740
        %v751 = vadd.f32 %v622, %v742
        %s752 = scalar_lea.vmem %s2, 32
        %v753 = vld [vmem:[%s752] sm:$0xf]
        %v754 = vld [vmem:[%s752 + $0x4] sm:$0xf]
        %v757 = vunpack.c.l.b16 %v753
        %v758 = vunpack.c.l.b16 %v754
        %v759 = vpack.c.b16 %v758, %v757
        %760 = vrot.lane.b32.xlu0 %v269, 109
        %v761 = vpop.permute.xlu0 %760
        %762 = vrot.lane.b32.xlu0 %v270, 109
        %v763 = vpop.permute.xlu0 %762
        %764 = vrot.lane.b32.xlu0 %v271, 109
        %v765 = vpop.permute.xlu0 %764
        %766 = vrot.lane.b32.xlu0 %v272, 109
        %v767 = vpop.permute.xlu0 %766
        %vm768 = vcmask 891904
        %v769 = vsel %vm768, %v761, %v763
        %v770 = vsel %vm768, %v763, %v765
        %v771 = vsel %vm768, %v765, %v767
        %v773 = vsel %vm285, %v759, 0
        %v776 = vsel %vm289, %v769, 0
        %v779 = vsel %vm289, %v770, 0
        %v782 = vsel %vm289, %v771, 0
        %v785 = vsel %vm289, %v767, 0
        %787 = vmatprep.subr.bf16.mxu0 0
        %788 = vmatpush1.bf16.msra.mxu0 0
        %789 = vmatprep.subr.bf16.mxu0 0
        %790 = vmatpush1.bf16.msra.mxu0 0
        %791 = vmatprep.subr.bf16.mxu0 0
        %792 = vmatpush1.bf16.msra.mxu0 0
        %793 = vmatprep.subr.bf16.mxu0 0
        %794 = vmatpush1.bf16.msra.mxu0 0
        %795 = vmatprep.subr.bf16.mxu0 0
        %796 = vmatpush1.bf16.msra.mxu0 0
        %797 = vmatprep.subr.bf16.mxu0 0
        %798 = vmatpush1.bf16.msra.mxu0 0
        %799 = vmatprep.subr.bf16.mxu0 0
        %800 = vmatpush1.bf16.msra.mxu0 0
        %801 = vmatprep.subr.bf16.mxu0 %v779
        %802 = vmatpush1.bf16.msra.mxu0 %v776
        %803 = vmatprep.subr.bf16.mxu0 0
        %804 = vmatpush2.bf16.msra.mxu0 0
        %805 = vmatprep.subr.bf16.mxu0 0
        %806 = vmatpush2.bf16.msra.mxu0 0
        %807 = vmatprep.subr.bf16.mxu0 0
        %808 = vmatpush2.bf16.msra.mxu0 0
        %809 = vmatprep.subr.bf16.mxu0 0
        %810 = vmatpush2.bf16.msra.mxu0 0
        %811 = vmatprep.subr.bf16.mxu0 0
        %812 = vmatpush2.bf16.msra.mxu0 0
        %813 = vmatprep.subr.bf16.mxu0 0
        %814 = vmatpush2.bf16.msra.mxu0 0
        %815 = vmatprep.subr.bf16.mxu0 0
        %816 = vmatpush2.bf16.msra.mxu0 0
        %817 = vmatprep.subr.bf16.mxu0 0
        %818 = vmatpush2.bf16.msra.mxu0 0
        %819 = vmatprep.mubr.bf16.mxu0 0
        %820 = vmatmul.mubr.bf16.gmra.mxu0 %v773
        %v821 = vpop.f32.mrf.mxu0
        %v822 = vadd.f32 0.0, %v821
        %v823 = vpop.f32.mrf.mxu0
        %v824 = vadd.f32 0.0, %v823
        %v825 = vpop.f32.mrf.mxu0
        %v826 = vadd.f32 0.0, %v825
        %v827 = vpop.f32.mrf.mxu0
        %v828 = vadd.f32 0.0, %v827
        %829 = vdwg.mxu0
        %830 = vmatprep.subr.bf16.mxu0 0
        %831 = vmatpush1.bf16.msra.mxu0 0
        %832 = vmatprep.subr.bf16.mxu0 0
        %833 = vmatpush1.bf16.msra.mxu0 0
        %834 = vmatprep.subr.bf16.mxu0 0
        %835 = vmatpush1.bf16.msra.mxu0 0
        %836 = vmatprep.subr.bf16.mxu0 0
        %837 = vmatpush1.bf16.msra.mxu0 0
        %838 = vmatprep.subr.bf16.mxu0 0
        %839 = vmatpush1.bf16.msra.mxu0 0
        %840 = vmatprep.subr.bf16.mxu0 0
        %841 = vmatpush1.bf16.msra.mxu0 0
        %842 = vmatprep.subr.bf16.mxu0 0
        %843 = vmatpush1.bf16.msra.mxu0 0
        %844 = vmatprep.subr.bf16.mxu0 %v785
        %845 = vmatpush1.bf16.msra.mxu0 %v782
        %846 = vmatprep.subr.bf16.mxu0 0
        %847 = vmatpush2.bf16.msra.mxu0 0
        %848 = vmatprep.subr.bf16.mxu0 0
        %849 = vmatpush2.bf16.msra.mxu0 0
        %850 = vmatprep.subr.bf16.mxu0 0
        %851 = vmatpush2.bf16.msra.mxu0 0
        %852 = vmatprep.subr.bf16.mxu0 0
        %853 = vmatpush2.bf16.msra.mxu0 0
        %854 = vmatprep.subr.bf16.mxu0 0
        %855 = vmatpush2.bf16.msra.mxu0 0
        %856 = vmatprep.subr.bf16.mxu0 0
        %857 = vmatpush2.bf16.msra.mxu0 0
        %858 = vmatprep.subr.bf16.mxu0 0
        %859 = vmatpush2.bf16.msra.mxu0 0
        %860 = vmatprep.subr.bf16.mxu0 0
        %861 = vmatpush2.bf16.msra.mxu0 0
        %862 = vmatprep.mubr.bf16.mxu0 0
        %863 = vmatmul.mubr.bf16.gmra.mxu0 %v773
        %v864 = vpop.f32.mrf.mxu0
        %v865 = vadd.f32 0.0, %v864
        %v866 = vpop.f32.mrf.mxu0
        %v867 = vadd.f32 0.0, %v866
        %v868 = vpop.f32.mrf.mxu0
        %v869 = vadd.f32 0.0, %v868
        %v870 = vpop.f32.mrf.mxu0
        %v871 = vadd.f32 0.0, %v870
        %872 = vdwg.mxu0
        %v873 = vadd.f32 %v744, %v822
        %v874 = vadd.f32 %v745, %v824
        %v875 = vadd.f32 %v746, %v865
        %v876 = vadd.f32 %v747, %v867
        %v877 = vadd.f32 %v748, %v826
        %v878 = vadd.f32 %v749, %v828
        %v879 = vadd.f32 %v750, %v869
        %v880 = vadd.f32 %v751, %v871
        %s881 = scalar_lea.vmem %s2, 40
        %v882 = vld [vmem:[%s881] sm:$0xf]
        %v883 = vld [vmem:[%s881 + $0x4] sm:$0xf]
        %v886 = vunpack.c.l.b16 %v882
        %v887 = vunpack.c.l.b16 %v883
        %v888 = vpack.c.b16 %v887, %v886
        %889 = vrot.lane.b32.xlu0 %v269, 108
        %v890 = vpop.permute.xlu0 %889
        %891 = vrot.lane.b32.xlu0 %v270, 108
        %v892 = vpop.permute.xlu0 %891
        %893 = vrot.lane.b32.xlu0 %v271, 108
        %v894 = vpop.permute.xlu0 %893
        %895 = vrot.lane.b32.xlu0 %v272, 108
        %v896 = vpop.permute.xlu0 %895
        %vm897 = vcmask 883712
        %v898 = vsel %vm897, %v890, %v892
        %v899 = vsel %vm897, %v892, %v894
        %v900 = vsel %vm897, %v894, %v896
        %v902 = vsel %vm285, %v888, 0
        %v905 = vsel %vm289, %v898, 0
        %v908 = vsel %vm289, %v899, 0
        %v911 = vsel %vm289, %v900, 0
        %v914 = vsel %vm289, %v896, 0
        %916 = vmatprep.subr.bf16.mxu0 0
        %917 = vmatpush1.bf16.msra.mxu0 0
        %918 = vmatprep.subr.bf16.mxu0 0
        %919 = vmatpush1.bf16.msra.mxu0 0
        %920 = vmatprep.subr.bf16.mxu0 0
        %921 = vmatpush1.bf16.msra.mxu0 0
        %922 = vmatprep.subr.bf16.mxu0 0
        %923 = vmatpush1.bf16.msra.mxu0 0
        %924 = vmatprep.subr.bf16.mxu0 0
        %925 = vmatpush1.bf16.msra.mxu0 0
        %926 = vmatprep.subr.bf16.mxu0 0
        %927 = vmatpush1.bf16.msra.mxu0 0
        %928 = vmatprep.subr.bf16.mxu0 0
        %929 = vmatpush1.bf16.msra.mxu0 0
        %930 = vmatprep.subr.bf16.mxu0 %v908
        %931 = vmatpush1.bf16.msra.mxu0 %v905
        %932 = vmatprep.subr.bf16.mxu0 0
        %933 = vmatpush2.bf16.msra.mxu0 0
        %934 = vmatprep.subr.bf16.mxu0 0
        %935 = vmatpush2.bf16.msra.mxu0 0
        %936 = vmatprep.subr.bf16.mxu0 0
        %937 = vmatpush2.bf16.msra.mxu0 0
        %938 = vmatprep.subr.bf16.mxu0 0
        %939 = vmatpush2.bf16.msra.mxu0 0
        %940 = vmatprep.subr.bf16.mxu0 0
        %941 = vmatpush2.bf16.msra.mxu0 0
        %942 = vmatprep.subr.bf16.mxu0 0
        %943 = vmatpush2.bf16.msra.mxu0 0
        %944 = vmatprep.subr.bf16.mxu0 0
        %945 = vmatpush2.bf16.msra.mxu0 0
        %946 = vmatprep.subr.bf16.mxu0 0
        %947 = vmatpush2.bf16.msra.mxu0 0
        %948 = vmatprep.mubr.bf16.mxu0 0
        %949 = vmatmul.mubr.bf16.gmra.mxu0 %v902
        %v950 = vpop.f32.mrf.mxu0
        %v951 = vadd.f32 0.0, %v950
        %v952 = vpop.f32.mrf.mxu0
        %v953 = vadd.f32 0.0, %v952
        %v954 = vpop.f32.mrf.mxu0
        %v955 = vadd.f32 0.0, %v954
        %v956 = vpop.f32.mrf.mxu0
        %v957 = vadd.f32 0.0, %v956
        %958 = vdwg.mxu0
        %959 = vmatprep.subr.bf16.mxu0 0
        %960 = vmatpush1.bf16.msra.mxu0 0
        %961 = vmatprep.subr.bf16.mxu0 0
        %962 = vmatpush1.bf16.msra.mxu0 0
        %963 = vmatprep.subr.bf16.mxu0 0
        %964 = vmatpush1.bf16.msra.mxu0 0
        %965 = vmatprep.subr.bf16.mxu0 0
        %966 = vmatpush1.bf16.msra.mxu0 0
        %967 = vmatprep.subr.bf16.mxu0 0
        %968 = vmatpush1.bf16.msra.mxu0 0
        %969 = vmatprep.subr.bf16.mxu0 0
        %970 = vmatpush1.bf16.msra.mxu0 0
        %971 = vmatprep.subr.bf16.mxu0 0
        %972 = vmatpush1.bf16.msra.mxu0 0
        %973 = vmatprep.subr.bf16.mxu0 %v914
        %974 = vmatpush1.bf16.msra.mxu0 %v911
        %975 = vmatprep.subr.bf16.mxu0 0
        %976 = vmatpush2.bf16.msra.mxu0 0
        %977 = vmatprep.subr.bf16.mxu0 0
        %978 = vmatpush2.bf16.msra.mxu0 0
        %979 = vmatprep.subr.bf16.mxu0 0
        %980 = vmatpush2.bf16.msra.mxu0 0
        %981 = vmatprep.subr.bf16.mxu0 0
        %982 = vmatpush2.bf16.msra.mxu0 0
        %983 = vmatprep.subr.bf16.mxu0 0
        %984 = vmatpush2.bf16.msra.mxu0 0
        %985 = vmatprep.subr.bf16.mxu0 0
        %986 = vmatpush2.bf16.msra.mxu0 0
        %987 = vmatprep.subr.bf16.mxu0 0
        %988 = vmatpush2.bf16.msra.mxu0 0
        %989 = vmatprep.subr.bf16.mxu0 0
        %990 = vmatpush2.bf16.msra.mxu0 0
        %991 = vmatprep.mubr.bf16.mxu0 0
        %992 = vmatmul.mubr.bf16.gmra.mxu0 %v902
        %v993 = vpop.f32.mrf.mxu0
        %v994 = vadd.f32 0.0, %v993
        %v995 = vpop.f32.mrf.mxu0
        %v996 = vadd.f32 0.0, %v995
        %v997 = vpop.f32.mrf.mxu0
        %v998 = vadd.f32 0.0, %v997
        %v999 = vpop.f32.mrf.mxu0
        %v1000 = vadd.f32 0.0, %v999
        %1001 = vdwg.mxu0
        %v1002 = vadd.f32 %v873, %v951
        %v1003 = vadd.f32 %v874, %v953
        %v1004 = vadd.f32 %v875, %v994
        %v1005 = vadd.f32 %v876, %v996
        %v1006 = vadd.f32 %v877, %v955
        %v1007 = vadd.f32 %v878, %v957
        %v1008 = vadd.f32 %v879, %v998
        %v1009 = vadd.f32 %v880, %v1000
        %s1010 = scalar_lea.vmem %s2, 48
        %v1011 = vld [vmem:[%s1010] sm:$0xf]
        %v1012 = vld [vmem:[%s1010 + $0x4] sm:$0xf]
        %v1015 = vunpack.c.l.b16 %v1011
        %v1016 = vunpack.c.l.b16 %v1012
        %v1017 = vpack.c.b16 %v1016, %v1015
        %1018 = vrot.lane.b32.xlu0 %v269, 92
        %v1019 = vpop.permute.xlu0 %1018
        %1020 = vrot.lane.b32.xlu0 %v270, 92
        %v1021 = vpop.permute.xlu0 %1020
        %1022 = vrot.lane.b32.xlu0 %v271, 92
        %v1023 = vpop.permute.xlu0 %1022
        %1024 = vrot.lane.b32.xlu0 %v272, 92
        %v1025 = vpop.permute.xlu0 %1024
        %vm1026 = vcmask 752640
        %v1027 = vsel %vm1026, %v1019, %v1021
        %v1028 = vsel %vm1026, %v1021, %v1023
        %v1029 = vsel %vm1026, %v1023, %v1025
        %v1031 = vsel %vm285, %v1017, 0
        %v1034 = vsel %vm289, %v1027, 0
        %v1037 = vsel %vm289, %v1028, 0
        %v1040 = vsel %vm289, %v1029, 0
        %v1043 = vsel %vm289, %v1025, 0
        %1045 = vmatprep.subr.bf16.mxu0 0
        %1046 = vmatpush1.bf16.msra.mxu0 0
        %1047 = vmatprep.subr.bf16.mxu0 0
        %1048 = vmatpush1.bf16.msra.mxu0 0
        %1049 = vmatprep.subr.bf16.mxu0 0
        %1050 = vmatpush1.bf16.msra.mxu0 0
        %1051 = vmatprep.subr.bf16.mxu0 0
        %1052 = vmatpush1.bf16.msra.mxu0 0
        %1053 = vmatprep.subr.bf16.mxu0 0
        %1054 = vmatpush1.bf16.msra.mxu0 0
        %1055 = vmatprep.subr.bf16.mxu0 0
        %1056 = vmatpush1.bf16.msra.mxu0 0
        %1057 = vmatprep.subr.bf16.mxu0 0
        %1058 = vmatpush1.bf16.msra.mxu0 0
        %1059 = vmatprep.subr.bf16.mxu0 %v1037
        %1060 = vmatpush1.bf16.msra.mxu0 %v1034
        %1061 = vmatprep.subr.bf16.mxu0 0
        %1062 = vmatpush2.bf16.msra.mxu0 0
        %1063 = vmatprep.subr.bf16.mxu0 0
        %1064 = vmatpush2.bf16.msra.mxu0 0
        %1065 = vmatprep.subr.bf16.mxu0 0
        %1066 = vmatpush2.bf16.msra.mxu0 0
        %1067 = vmatprep.subr.bf16.mxu0 0
        %1068 = vmatpush2.bf16.msra.mxu0 0
        %1069 = vmatprep.subr.bf16.mxu0 0
        %1070 = vmatpush2.bf16.msra.mxu0 0
        %1071 = vmatprep.subr.bf16.mxu0 0
        %1072 = vmatpush2.bf16.msra.mxu0 0
        %1073 = vmatprep.subr.bf16.mxu0 0
        %1074 = vmatpush2.bf16.msra.mxu0 0
        %1075 = vmatprep.subr.bf16.mxu0 0
        %1076 = vmatpush2.bf16.msra.mxu0 0
        %1077 = vmatprep.mubr.bf16.mxu0 0
        %1078 = vmatmul.mubr.bf16.gmra.mxu0 %v1031
        %v1079 = vpop.f32.mrf.mxu0
        %v1080 = vadd.f32 0.0, %v1079
        %v1081 = vpop.f32.mrf.mxu0
        %v1082 = vadd.f32 0.0, %v1081
        %v1083 = vpop.f32.mrf.mxu0
        %v1084 = vadd.f32 0.0, %v1083
        %v1085 = vpop.f32.mrf.mxu0
        %v1086 = vadd.f32 0.0, %v1085
        %1087 = vdwg.mxu0
        %1088 = vmatprep.subr.bf16.mxu0 0
        %1089 = vmatpush1.bf16.msra.mxu0 0
        %1090 = vmatprep.subr.bf16.mxu0 0
        %1091 = vmatpush1.bf16.msra.mxu0 0
        %1092 = vmatprep.subr.bf16.mxu0 0
        %1093 = vmatpush1.bf16.msra.mxu0 0
        %1094 = vmatprep.subr.bf16.mxu0 0
        %1095 = vmatpush1.bf16.msra.mxu0 0
        %1096 = vmatprep.subr.bf16.mxu0 0
        %1097 = vmatpush1.bf16.msra.mxu0 0
        %1098 = vmatprep.subr.bf16.mxu0 0
        %1099 = vmatpush1.bf16.msra.mxu0 0
        %1100 = vmatprep.subr.bf16.mxu0 0
        %1101 = vmatpush1.bf16.msra.mxu0 0
        %1102 = vmatprep.subr.bf16.mxu0 %v1043
        %1103 = vmatpush1.bf16.msra.mxu0 %v1040
        %1104 = vmatprep.subr.bf16.mxu0 0
        %1105 = vmatpush2.bf16.msra.mxu0 0
        %1106 = vmatprep.subr.bf16.mxu0 0
        %1107 = vmatpush2.bf16.msra.mxu0 0
        %1108 = vmatprep.subr.bf16.mxu0 0
        %1109 = vmatpush2.bf16.msra.mxu0 0
        %1110 = vmatprep.subr.bf16.mxu0 0
        %1111 = vmatpush2.bf16.msra.mxu0 0
        %1112 = vmatprep.subr.bf16.mxu0 0
        %1113 = vmatpush2.bf16.msra.mxu0 0
        %1114 = vmatprep.subr.bf16.mxu0 0
        %1115 = vmatpush2.bf16.msra.mxu0 0
        %1116 = vmatprep.subr.bf16.mxu0 0
        %1117 = vmatpush2.bf16.msra.mxu0 0
        %1118 = vmatprep.subr.bf16.mxu0 0
        %1119 = vmatpush2.bf16.msra.mxu0 0
        %1120 = vmatprep.mubr.bf16.mxu0 0
        %1121 = vmatmul.mubr.bf16.gmra.mxu0 %v1031
        %v1122 = vpop.f32.mrf.mxu0
        %v1123 = vadd.f32 0.0, %v1122
        %v1124 = vpop.f32.mrf.mxu0
        %v1125 = vadd.f32 0.0, %v1124
        %v1126 = vpop.f32.mrf.mxu0
        %v1127 = vadd.f32 0.0, %v1126
        %v1128 = vpop.f32.mrf.mxu0
        %v1129 = vadd.f32 0.0, %v1128
        %1130 = vdwg.mxu0
        %v1131 = vadd.f32 %v1002, %v1080
        %v1132 = vadd.f32 %v1003, %v1082
        %v1133 = vadd.f32 %v1004, %v1123
        %v1134 = vadd.f32 %v1005, %v1125
        %v1135 = vadd.f32 %v1006, %v1084
        %v1136 = vadd.f32 %v1007, %v1086
        %v1137 = vadd.f32 %v1008, %v1127
        %v1138 = vadd.f32 %v1009, %v1129
        %s1139 = scalar_lea.vmem %s2, 56
        %v1140 = vld [vmem:[%s1139] sm:$0xf]
        %v1141 = vld [vmem:[%s1139 + $0x4] sm:$0xf]
        %v1144 = vunpack.c.l.b16 %v1140
        %v1145 = vunpack.c.l.b16 %v1141
        %v1146 = vpack.c.b16 %v1145, %v1144
        %1147 = vrot.lane.b32.xlu0 %v269, 91
        %v1148 = vpop.permute.xlu0 %1147
        %1149 = vrot.lane.b32.xlu0 %v270, 91
        %v1150 = vpop.permute.xlu0 %1149
        %1151 = vrot.lane.b32.xlu0 %v271, 91
        %v1152 = vpop.permute.xlu0 %1151
        %1153 = vrot.lane.b32.xlu0 %v272, 91
        %v1154 = vpop.permute.xlu0 %1153
        %vm1155 = vcmask 744448
        %v1156 = vsel %vm1155, %v1148, %v1150
        %v1157 = vsel %vm1155, %v1150, %v1152
        %v1158 = vsel %vm1155, %v1152, %v1154
        %v1160 = vsel %vm285, %v1146, 0
        %v1163 = vsel %vm289, %v1156, 0
        %v1166 = vsel %vm289, %v1157, 0
        %v1169 = vsel %vm289, %v1158, 0
        %v1172 = vsel %vm289, %v1154, 0
        %1174 = vmatprep.subr.bf16.mxu0 0
        %1175 = vmatpush1.bf16.msra.mxu0 0
        %1176 = vmatprep.subr.bf16.mxu0 0
        %1177 = vmatpush1.bf16.msra.mxu0 0
        %1178 = vmatprep.subr.bf16.mxu0 0
        %1179 = vmatpush1.bf16.msra.mxu0 0
        %1180 = vmatprep.subr.bf16.mxu0 0
        %1181 = vmatpush1.bf16.msra.mxu0 0
        %1182 = vmatprep.subr.bf16.mxu0 0
        %1183 = vmatpush1.bf16.msra.mxu0 0
        %1184 = vmatprep.subr.bf16.mxu0 0
        %1185 = vmatpush1.bf16.msra.mxu0 0
        %1186 = vmatprep.subr.bf16.mxu0 0
        %1187 = vmatpush1.bf16.msra.mxu0 0
        %1188 = vmatprep.subr.bf16.mxu0 %v1166
        %1189 = vmatpush1.bf16.msra.mxu0 %v1163
        %1190 = vmatprep.subr.bf16.mxu0 0
        %1191 = vmatpush2.bf16.msra.mxu0 0
        %1192 = vmatprep.subr.bf16.mxu0 0
        %1193 = vmatpush2.bf16.msra.mxu0 0
        %1194 = vmatprep.subr.bf16.mxu0 0
        %1195 = vmatpush2.bf16.msra.mxu0 0
        %1196 = vmatprep.subr.bf16.mxu0 0
        %1197 = vmatpush2.bf16.msra.mxu0 0
        %1198 = vmatprep.subr.bf16.mxu0 0
        %1199 = vmatpush2.bf16.msra.mxu0 0
        %1200 = vmatprep.subr.bf16.mxu0 0
        %1201 = vmatpush2.bf16.msra.mxu0 0
        %1202 = vmatprep.subr.bf16.mxu0 0
        %1203 = vmatpush2.bf16.msra.mxu0 0
        %1204 = vmatprep.subr.bf16.mxu0 0
        %1205 = vmatpush2.bf16.msra.mxu0 0
        %1206 = vmatprep.mubr.bf16.mxu0 0
        %1207 = vmatmul.mubr.bf16.gmra.mxu0 %v1160
        %v1208 = vpop.f32.mrf.mxu0
        %v1209 = vadd.f32 0.0, %v1208
        %v1210 = vpop.f32.mrf.mxu0
        %v1211 = vadd.f32 0.0, %v1210
        %v1212 = vpop.f32.mrf.mxu0
        %v1213 = vadd.f32 0.0, %v1212
        %v1214 = vpop.f32.mrf.mxu0
        %v1215 = vadd.f32 0.0, %v1214
        %1216 = vdwg.mxu0
        %1217 = vmatprep.subr.bf16.mxu0 0
        %1218 = vmatpush1.bf16.msra.mxu0 0
        %1219 = vmatprep.subr.bf16.mxu0 0
        %1220 = vmatpush1.bf16.msra.mxu0 0
        %1221 = vmatprep.subr.bf16.mxu0 0
        %1222 = vmatpush1.bf16.msra.mxu0 0
        %1223 = vmatprep.subr.bf16.mxu0 0
        %1224 = vmatpush1.bf16.msra.mxu0 0
        %1225 = vmatprep.subr.bf16.mxu0 0
        %1226 = vmatpush1.bf16.msra.mxu0 0
        %1227 = vmatprep.subr.bf16.mxu0 0
        %1228 = vmatpush1.bf16.msra.mxu0 0
        %1229 = vmatprep.subr.bf16.mxu0 0
        %1230 = vmatpush1.bf16.msra.mxu0 0
        %1231 = vmatprep.subr.bf16.mxu0 %v1172
        %1232 = vmatpush1.bf16.msra.mxu0 %v1169
        %1233 = vmatprep.subr.bf16.mxu0 0
        %1234 = vmatpush2.bf16.msra.mxu0 0
        %1235 = vmatprep.subr.bf16.mxu0 0
        %1236 = vmatpush2.bf16.msra.mxu0 0
        %1237 = vmatprep.subr.bf16.mxu0 0
        %1238 = vmatpush2.bf16.msra.mxu0 0
        %1239 = vmatprep.subr.bf16.mxu0 0
        %1240 = vmatpush2.bf16.msra.mxu0 0
        %1241 = vmatprep.subr.bf16.mxu0 0
        %1242 = vmatpush2.bf16.msra.mxu0 0
        %1243 = vmatprep.subr.bf16.mxu0 0
        %1244 = vmatpush2.bf16.msra.mxu0 0
        %1245 = vmatprep.subr.bf16.mxu0 0
        %1246 = vmatpush2.bf16.msra.mxu0 0
        %1247 = vmatprep.subr.bf16.mxu0 0
        %1248 = vmatpush2.bf16.msra.mxu0 0
        %1249 = vmatprep.mubr.bf16.mxu0 0
        %1250 = vmatmul.mubr.bf16.gmra.mxu0 %v1160
        %v1251 = vpop.f32.mrf.mxu0
        %v1252 = vadd.f32 0.0, %v1251
        %v1253 = vpop.f32.mrf.mxu0
        %v1254 = vadd.f32 0.0, %v1253
        %v1255 = vpop.f32.mrf.mxu0
        %v1256 = vadd.f32 0.0, %v1255
        %v1257 = vpop.f32.mrf.mxu0
        %v1258 = vadd.f32 0.0, %v1257
        %1259 = vdwg.mxu0
        %v1260 = vadd.f32 %v1131, %v1209
        %v1261 = vadd.f32 %v1132, %v1211
        %v1262 = vadd.f32 %v1133, %v1252
        %v1263 = vadd.f32 %v1134, %v1254
        %v1264 = vadd.f32 %v1135, %v1213
        %v1265 = vadd.f32 %v1136, %v1215
        %v1266 = vadd.f32 %v1137, %v1256
        %v1267 = vadd.f32 %v1138, %v1258
        %s1268 = scalar_lea.vmem %s2, 64
        %v1269 = vld [vmem:[%s1268] sm:$0xf]
        %v1270 = vld [vmem:[%s1268 + $0x4] sm:$0xf]
        %v1273 = vunpack.c.l.b16 %v1269
        %v1274 = vunpack.c.l.b16 %v1270
        %v1275 = vpack.c.b16 %v1274, %v1273
        %1276 = vrot.lane.b32.xlu0 %v269, 90
        %v1277 = vpop.permute.xlu0 %1276
        %1278 = vrot.lane.b32.xlu0 %v270, 90
        %v1279 = vpop.permute.xlu0 %1278
        %1280 = vrot.lane.b32.xlu0 %v271, 90
        %v1281 = vpop.permute.xlu0 %1280
        %1282 = vrot.lane.b32.xlu0 %v272, 90
        %v1283 = vpop.permute.xlu0 %1282
        %vm1284 = vcmask 736256
        %v1285 = vsel %vm1284, %v1277, %v1279
        %v1286 = vsel %vm1284, %v1279, %v1281
        %v1287 = vsel %vm1284, %v1281, %v1283
        %v1289 = vsel %vm285, %v1275, 0
        %v1292 = vsel %vm289, %v1285, 0
        %v1295 = vsel %vm289, %v1286, 0
        %v1298 = vsel %vm289, %v1287, 0
        %v1301 = vsel %vm289, %v1283, 0
        %1303 = vmatprep.subr.bf16.mxu0 0
        %1304 = vmatpush1.bf16.msra.mxu0 0
        %1305 = vmatprep.subr.bf16.mxu0 0
        %1306 = vmatpush1.bf16.msra.mxu0 0
        %1307 = vmatprep.subr.bf16.mxu0 0
        %1308 = vmatpush1.bf16.msra.mxu0 0
        %1309 = vmatprep.subr.bf16.mxu0 0
        %1310 = vmatpush1.bf16.msra.mxu0 0
        %1311 = vmatprep.subr.bf16.mxu0 0
        %1312 = vmatpush1.bf16.msra.mxu0 0
        %1313 = vmatprep.subr.bf16.mxu0 0
        %1314 = vmatpush1.bf16.msra.mxu0 0
        %1315 = vmatprep.subr.bf16.mxu0 0
        %1316 = vmatpush1.bf16.msra.mxu0 0
        %1317 = vmatprep.subr.bf16.mxu0 %v1295
        %1318 = vmatpush1.bf16.msra.mxu0 %v1292
        %1319 = vmatprep.subr.bf16.mxu0 0
        %1320 = vmatpush2.bf16.msra.mxu0 0
        %1321 = vmatprep.subr.bf16.mxu0 0
        %1322 = vmatpush2.bf16.msra.mxu0 0
        %1323 = vmatprep.subr.bf16.mxu0 0
        %1324 = vmatpush2.bf16.msra.mxu0 0
        %1325 = vmatprep.subr.bf16.mxu0 0
        %1326 = vmatpush2.bf16.msra.mxu0 0
        %1327 = vmatprep.subr.bf16.mxu0 0
        %1328 = vmatpush2.bf16.msra.mxu0 0
        %1329 = vmatprep.subr.bf16.mxu0 0
        %1330 = vmatpush2.bf16.msra.mxu0 0
        %1331 = vmatprep.subr.bf16.mxu0 0
        %1332 = vmatpush2.bf16.msra.mxu0 0
        %1333 = vmatprep.subr.bf16.mxu0 0
        %1334 = vmatpush2.bf16.msra.mxu0 0
        %1335 = vmatprep.mubr.bf16.mxu0 0
        %1336 = vmatmul.mubr.bf16.gmra.mxu0 %v1289
        %v1337 = vpop.f32.mrf.mxu0
        %v1338 = vadd.f32 0.0, %v1337
        %v1339 = vpop.f32.mrf.mxu0
        %v1340 = vadd.f32 0.0, %v1339
        %v1341 = vpop.f32.mrf.mxu0
        %v1342 = vadd.f32 0.0, %v1341
        %v1343 = vpop.f32.mrf.mxu0
        %v1344 = vadd.f32 0.0, %v1343
        %1345 = vdwg.mxu0
        %1346 = vmatprep.subr.bf16.mxu0 0
        %1347 = vmatpush1.bf16.msra.mxu0 0
        %1348 = vmatprep.subr.bf16.mxu0 0
        %1349 = vmatpush1.bf16.msra.mxu0 0
        %1350 = vmatprep.subr.bf16.mxu0 0
        %1351 = vmatpush1.bf16.msra.mxu0 0
        %1352 = vmatprep.subr.bf16.mxu0 0
        %1353 = vmatpush1.bf16.msra.mxu0 0
        %1354 = vmatprep.subr.bf16.mxu0 0
        %1355 = vmatpush1.bf16.msra.mxu0 0
        %1356 = vmatprep.subr.bf16.mxu0 0
        %1357 = vmatpush1.bf16.msra.mxu0 0
        %1358 = vmatprep.subr.bf16.mxu0 0
        %1359 = vmatpush1.bf16.msra.mxu0 0
        %1360 = vmatprep.subr.bf16.mxu0 %v1301
        %1361 = vmatpush1.bf16.msra.mxu0 %v1298
        %1362 = vmatprep.subr.bf16.mxu0 0
        %1363 = vmatpush2.bf16.msra.mxu0 0
        %1364 = vmatprep.subr.bf16.mxu0 0
        %1365 = vmatpush2.bf16.msra.mxu0 0
        %1366 = vmatprep.subr.bf16.mxu0 0
        %1367 = vmatpush2.bf16.msra.mxu0 0
        %1368 = vmatprep.subr.bf16.mxu0 0
        %1369 = vmatpush2.bf16.msra.mxu0 0
        %1370 = vmatprep.subr.bf16.mxu0 0
        %1371 = vmatpush2.bf16.msra.mxu0 0
        %1372 = vmatprep.subr.bf16.mxu0 0
        %1373 = vmatpush2.bf16.msra.mxu0 0
        %1374 = vmatprep.subr.bf16.mxu0 0
        %1375 = vmatpush2.bf16.msra.mxu0 0
        %1376 = vmatprep.subr.bf16.mxu0 0
        %1377 = vmatpush2.bf16.msra.mxu0 0
        %1378 = vmatprep.mubr.bf16.mxu0 0
        %1379 = vmatmul.mubr.bf16.gmra.mxu0 %v1289
        %v1380 = vpop.f32.mrf.mxu0
        %v1381 = vadd.f32 0.0, %v1380
        %v1382 = vpop.f32.mrf.mxu0
        %v1383 = vadd.f32 0.0, %v1382
        %v1384 = vpop.f32.mrf.mxu0
        %v1385 = vadd.f32 0.0, %v1384
        %v1386 = vpop.f32.mrf.mxu0
        %v1387 = vadd.f32 0.0, %v1386
        %1388 = vdwg.mxu0
        %v1389 = vadd.f32 %v1260, %v1338
        %v1390 = vadd.f32 %v1261, %v1340
        %v1391 = vadd.f32 %v1262, %v1381
        %v1392 = vadd.f32 %v1263, %v1383
        %v1393 = vadd.f32 %v1264, %v1342
        %v1394 = vadd.f32 %v1265, %v1344
        %v1395 = vadd.f32 %v1266, %v1385
        %v1396 = vadd.f32 %v1267, %v1387
        %v1397 = vld [vmem:[%s3] sm:$0xff]
        %v1398 = vld [vmem:[%s3 + $0x8] sm:$0xff]
        %1400 = vset.pattern.permute.xlu0 0
        %1401 = vperm.xlu0 %1400, %v1397
        %v1402 = vpop.permute.xlu0 %1401
        %1405 = vset.pattern.permute.xlu0 0
        %1406 = vperm.xlu0 %1405, %v1398
        %v1407 = vpop.permute.xlu0 %1406
        %v1409 = vadd.f32 %v1389, %v1402
        %v1410 = vadd.f32 %v1390, %v1402
        %v1411 = vadd.f32 %v1391, %v1402
        %v1412 = vadd.f32 %v1392, %v1402
        %v1413 = vadd.f32 %v1393, %v1407
        %v1414 = vadd.f32 %v1394, %v1407
        %v1415 = vadd.f32 %v1395, %v1407
        %v1416 = vadd.f32 %v1396, %v1407
        %v1417 = vmax.f32 %v1409, 0.0
        %v1418 = vmax.f32 %v1410, 0.0
        %v1419 = vmax.f32 %v1411, 0.0
        %v1420 = vmax.f32 %v1412, 0.0
        %v1421 = vmax.f32 %v1413, 0.0
        %v1422 = vmax.f32 %v1414, 0.0
        %v1423 = vmax.f32 %v1415, 0.0
        %v1424 = vmax.f32 %v1416, 0.0
        %v1425 = vld [vmem:[%s0] sm:$0xf]
        %v1427 = vlaneseq
        %v1428 = vshrl.u32 %v1427, 7
        %v1429 = vsub.s32 0, %v1428
        %v1430 = vrot.slane %v1425, %v1429
        %v1431 = vlaneseq
        %v1432 = vshrl.u32 %v1431, 7
        %v1433 = vsub.s32 1, %v1432
        %v1434 = vrot.slane %v1425, %v1433
        %v1435 = vlaneseq
        %v1436 = vshrl.u32 %v1435, 7
        %v1437 = vsub.s32 2, %v1436
        %v1438 = vrot.slane %v1425, %v1437
        %v1439 = vlaneseq
        %v1440 = vshrl.u32 %v1439, 7
        %v1441 = vsub.s32 3, %v1440
        %v1442 = vrot.slane %v1425, %v1441
        %v1447 = vmul.f32 %v1417, %v1430
        %v1448 = vmul.f32 %v1418, %v1434
        %v1449 = vmul.f32 %v1419, %v1438
        %v1450 = vmul.f32 %v1420, %v1442
        %v1451 = vmul.f32 %v1421, %v1430
        %v1452 = vmul.f32 %v1422, %v1434
        %v1453 = vmul.f32 %v1423, %v1438
        %v1454 = vmul.f32 %v1424, %v1442
        %v1455 = vpack.c.bf16 %v1451, %v1447
        %v1456 = vpack.c.bf16 %v1452, %v1448
        %v1457 = vpack.c.bf16 %v1453, %v1449
        %v1458 = vpack.c.bf16 %v1454, %v1450
        %v1459 = vld [vmem:[%s4] sm:$0xf]
        %v1460 = vld [vmem:[%s4 + $0x4] sm:$0xf]
        %s1461 = scalar_lea.vmem %s4, 8
        %v1462 = vld [vmem:[%s1461] sm:$0xf]
        %v1463 = vld [vmem:[%s1461 + $0x4] sm:$0xf]
        %v1466 = vunpack.c.l.b16 %v1462
        %v1467 = vunpack.c.l.b16 %v1463
        %v1468 = vpack.c.b16 %v1467, %v1466
        %1473 = vrot.lane.b32.xlu0 %v1455, 127
        %v1474 = vpop.permute.xlu0 %1473
        %1475 = vrot.lane.b32.xlu0 %v1456, 127
        %v1476 = vpop.permute.xlu0 %1475
        %1477 = vrot.lane.b32.xlu0 %v1457, 127
        %v1478 = vpop.permute.xlu0 %1477
        %1479 = vrot.lane.b32.xlu0 %v1458, 127
        %v1480 = vpop.permute.xlu0 %1479
        %v1481 = vsel %vm281, %v1474, %v1476
        %v1482 = vsel %vm281, %v1476, %v1478
        %v1483 = vsel %vm281, %v1478, %v1480
        %vm1487 = vcmask 130048
        %v1489 = vsel %vm1487, %v1468, 0
        %1491 = vmatprep.subr.bf16.mxu0 0
        %1492 = vmatpush1.bf16.msra.mxu0 0
        %1493 = vmatprep.subr.bf16.mxu0 0
        %1494 = vmatpush1.bf16.msra.mxu0 0
        %1495 = vmatprep.subr.bf16.mxu0 0
        %1496 = vmatpush1.bf16.msra.mxu0 0
        %1497 = vmatprep.subr.bf16.mxu0 0
        %1498 = vmatpush1.bf16.msra.mxu0 0
        %1499 = vmatprep.subr.bf16.mxu0 0
        %1500 = vmatpush1.bf16.msra.mxu0 0
        %1501 = vmatprep.subr.bf16.mxu0 0
        %1502 = vmatpush1.bf16.msra.mxu0 0
        %1503 = vmatprep.subr.bf16.mxu0 0
        %1504 = vmatpush1.bf16.msra.mxu0 0
        %1505 = vmatprep.subr.bf16.mxu0 %v1482
        %1506 = vmatpush1.bf16.msra.mxu0 %v1481
        %1507 = vmatprep.subr.bf16.mxu0 0
        %1508 = vmatpush2.bf16.msra.mxu0 0
        %1509 = vmatprep.subr.bf16.mxu0 0
        %1510 = vmatpush2.bf16.msra.mxu0 0
        %1511 = vmatprep.subr.bf16.mxu0 0
        %1512 = vmatpush2.bf16.msra.mxu0 0
        %1513 = vmatprep.subr.bf16.mxu0 0
        %1514 = vmatpush2.bf16.msra.mxu0 0
        %1515 = vmatprep.subr.bf16.mxu0 0
        %1516 = vmatpush2.bf16.msra.mxu0 0
        %1517 = vmatprep.subr.bf16.mxu0 0
        %1518 = vmatpush2.bf16.msra.mxu0 0
        %1519 = vmatprep.subr.bf16.mxu0 0
        %1520 = vmatpush2.bf16.msra.mxu0 0
        %1521 = vmatprep.subr.bf16.mxu0 0
        %1522 = vmatpush2.bf16.msra.mxu0 0
        %1523 = vmatprep.mubr.bf16.mxu0 0
        %1524 = vmatmul.mubr.bf16.gmra.mxu0 %v1489
        %v1525 = vpop.f32.mrf.mxu0
        %v1526 = vadd.f32 0.0, %v1525
        %v1527 = vpop.f32.mrf.mxu0
        %v1528 = vadd.f32 0.0, %v1527
        %v1529 = vpop.f32.mrf.mxu0
        %v1530 = vadd.f32 0.0, %v1529
        %v1531 = vpop.f32.mrf.mxu0
        %v1532 = vadd.f32 0.0, %v1531
        %1533 = vdwg.mxu0
        %1534 = vmatprep.subr.bf16.mxu0 0
        %1535 = vmatpush1.bf16.msra.mxu0 0
        %1536 = vmatprep.subr.bf16.mxu0 0
        %1537 = vmatpush1.bf16.msra.mxu0 0
        %1538 = vmatprep.subr.bf16.mxu0 0
        %1539 = vmatpush1.bf16.msra.mxu0 0
        %1540 = vmatprep.subr.bf16.mxu0 0
        %1541 = vmatpush1.bf16.msra.mxu0 0
        %1542 = vmatprep.subr.bf16.mxu0 0
        %1543 = vmatpush1.bf16.msra.mxu0 0
        %1544 = vmatprep.subr.bf16.mxu0 0
        %1545 = vmatpush1.bf16.msra.mxu0 0
        %1546 = vmatprep.subr.bf16.mxu0 0
        %1547 = vmatpush1.bf16.msra.mxu0 0
        %1548 = vmatprep.subr.bf16.mxu0 0
        %1549 = vmatpush1.bf16.msra.mxu0 %v1483
        %1550 = vmatprep.subr.bf16.mxu0 0
        %1551 = vmatpush2.bf16.msra.mxu0 0
        %1552 = vmatprep.subr.bf16.mxu0 0
        %1553 = vmatpush2.bf16.msra.mxu0 0
        %1554 = vmatprep.subr.bf16.mxu0 0
        %1555 = vmatpush2.bf16.msra.mxu0 0
        %1556 = vmatprep.subr.bf16.mxu0 0
        %1557 = vmatpush2.bf16.msra.mxu0 0
        %1558 = vmatprep.subr.bf16.mxu0 0
        %1559 = vmatpush2.bf16.msra.mxu0 0
        %1560 = vmatprep.subr.bf16.mxu0 0
        %1561 = vmatpush2.bf16.msra.mxu0 0
        %1562 = vmatprep.subr.bf16.mxu0 0
        %1563 = vmatpush2.bf16.msra.mxu0 0
        %1564 = vmatprep.subr.bf16.mxu0 0
        %1565 = vmatpush2.bf16.msra.mxu0 0
        %1566 = vmatprep.mubr.bf16.mxu0 0
        %1567 = vmatmul.mubr.bf16.gmra.mxu0 %v1489
        %v1568 = vpop.f32.mrf.mxu0
        %v1569 = vadd.f32 0.0, %v1568
        %v1570 = vpop.f32.mrf.mxu0
        %v1571 = vpop.f32.mrf.mxu0
        %v1572 = vadd.f32 0.0, %v1571
        %v1573 = vpop.f32.mrf.mxu0
        %1574 = vdwg.mxu0
        %v1577 = vunpack.c.l.b16 %v1459
        %v1578 = vunpack.c.l.b16 %v1460
        %v1579 = vpack.c.b16 %v1578, %v1577
        %v1581 = vsel %vm1487, %v1579, 0
        %1583 = vmatprep.subr.bf16.mxu0 0
        %1584 = vmatpush1.bf16.msra.mxu0 0
        %1585 = vmatprep.subr.bf16.mxu0 0
        %1586 = vmatpush1.bf16.msra.mxu0 0
        %1587 = vmatprep.subr.bf16.mxu0 0
        %1588 = vmatpush1.bf16.msra.mxu0 0
        %1589 = vmatprep.subr.bf16.mxu0 0
        %1590 = vmatpush1.bf16.msra.mxu0 0
        %1591 = vmatprep.subr.bf16.mxu0 0
        %1592 = vmatpush1.bf16.msra.mxu0 0
        %1593 = vmatprep.subr.bf16.mxu0 0
        %1594 = vmatpush1.bf16.msra.mxu0 0
        %1595 = vmatprep.subr.bf16.mxu0 0
        %1596 = vmatpush1.bf16.msra.mxu0 0
        %1597 = vmatprep.subr.bf16.mxu0 %v1456
        %1598 = vmatpush1.bf16.msra.mxu0 %v1455
        %1599 = vmatprep.subr.bf16.mxu0 0
        %1600 = vmatpush2.bf16.msra.mxu0 0
        %1601 = vmatprep.subr.bf16.mxu0 0
        %1602 = vmatpush2.bf16.msra.mxu0 0
        %1603 = vmatprep.subr.bf16.mxu0 0
        %1604 = vmatpush2.bf16.msra.mxu0 0
        %1605 = vmatprep.subr.bf16.mxu0 0
        %1606 = vmatpush2.bf16.msra.mxu0 0
        %1607 = vmatprep.subr.bf16.mxu0 0
        %1608 = vmatpush2.bf16.msra.mxu0 0
        %1609 = vmatprep.subr.bf16.mxu0 0
        %1610 = vmatpush2.bf16.msra.mxu0 0
        %1611 = vmatprep.subr.bf16.mxu0 0
        %1612 = vmatpush2.bf16.msra.mxu0 0
        %1613 = vmatprep.subr.bf16.mxu0 0
        %1614 = vmatpush2.bf16.msra.mxu0 0
        %1615 = vmatprep.mubr.bf16.mxu0 0
        %1616 = vmatmul.mubr.bf16.gmra.mxu0 %v1581
        %v1617 = vpop.f32.mrf.mxu0
        %v1618 = vadd.f32 %v1526, %v1617
        %v1619 = vpop.f32.mrf.mxu0
        %v1620 = vadd.f32 %v1528, %v1619
        %v1621 = vpop.f32.mrf.mxu0
        %v1622 = vadd.f32 %v1530, %v1621
        %v1623 = vpop.f32.mrf.mxu0
        %v1624 = vadd.f32 %v1532, %v1623
        %1625 = vdwg.mxu0
        %1626 = vmatprep.subr.bf16.mxu0 0
        %1627 = vmatpush1.bf16.msra.mxu0 0
        %1628 = vmatprep.subr.bf16.mxu0 0
        %1629 = vmatpush1.bf16.msra.mxu0 0
        %1630 = vmatprep.subr.bf16.mxu0 0
        %1631 = vmatpush1.bf16.msra.mxu0 0
        %1632 = vmatprep.subr.bf16.mxu0 0
        %1633 = vmatpush1.bf16.msra.mxu0 0
        %1634 = vmatprep.subr.bf16.mxu0 0
        %1635 = vmatpush1.bf16.msra.mxu0 0
        %1636 = vmatprep.subr.bf16.mxu0 0
        %1637 = vmatpush1.bf16.msra.mxu0 0
        %1638 = vmatprep.subr.bf16.mxu0 0
        %1639 = vmatpush1.bf16.msra.mxu0 0
        %1640 = vmatprep.subr.bf16.mxu0 0
        %1641 = vmatpush1.bf16.msra.mxu0 %v1457
        %1642 = vmatprep.subr.bf16.mxu0 0
        %1643 = vmatpush2.bf16.msra.mxu0 0
        %1644 = vmatprep.subr.bf16.mxu0 0
        %1645 = vmatpush2.bf16.msra.mxu0 0
        %1646 = vmatprep.subr.bf16.mxu0 0
        %1647 = vmatpush2.bf16.msra.mxu0 0
        %1648 = vmatprep.subr.bf16.mxu0 0
        %1649 = vmatpush2.bf16.msra.mxu0 0
        %1650 = vmatprep.subr.bf16.mxu0 0
        %1651 = vmatpush2.bf16.msra.mxu0 0
        %1652 = vmatprep.subr.bf16.mxu0 0
        %1653 = vmatpush2.bf16.msra.mxu0 0
        %1654 = vmatprep.subr.bf16.mxu0 0
        %1655 = vmatpush2.bf16.msra.mxu0 0
        %1656 = vmatprep.subr.bf16.mxu0 0
        %1657 = vmatpush2.bf16.msra.mxu0 0
        %1658 = vmatprep.mubr.bf16.mxu0 0
        %1659 = vmatmul.mubr.bf16.gmra.mxu0 %v1581
        %v1660 = vpop.f32.mrf.mxu0
        %v1661 = vadd.f32 %v1569, %v1660
        %v1662 = vpop.f32.mrf.mxu0
        %v1663 = vpop.f32.mrf.mxu0
        %v1664 = vadd.f32 %v1572, %v1663
        %v1665 = vpop.f32.mrf.mxu0
        %1666 = vdwg.mxu0
        %s1667 = scalar_lea.vmem %s4, 16
        %v1668 = vld [vmem:[%s1667] sm:$0xf]
        %v1669 = vld [vmem:[%s1667 + $0x4] sm:$0xf]
        %v1672 = vunpack.c.l.b16 %v1668
        %v1673 = vunpack.c.l.b16 %v1669
        %v1674 = vpack.c.b16 %v1673, %v1672
        %1675 = vrot.lane.b32.xlu0 %v1455, 126
        %v1676 = vpop.permute.xlu0 %1675
        %1677 = vrot.lane.b32.xlu0 %v1456, 126
        %v1678 = vpop.permute.xlu0 %1677
        %1679 = vrot.lane.b32.xlu0 %v1457, 126
        %v1680 = vpop.permute.xlu0 %1679
        %1681 = vrot.lane.b32.xlu0 %v1458, 126
        %v1682 = vpop.permute.xlu0 %1681
        %v1683 = vsel %vm510, %v1676, %v1678
        %v1684 = vsel %vm510, %v1678, %v1680
        %v1685 = vsel %vm510, %v1680, %v1682
        %v1690 = vsel %vm1487, %v1674, 0
        %1692 = vmatprep.subr.bf16.mxu0 0
        %1693 = vmatpush1.bf16.msra.mxu0 0
        %1694 = vmatprep.subr.bf16.mxu0 0
        %1695 = vmatpush1.bf16.msra.mxu0 0
        %1696 = vmatprep.subr.bf16.mxu0 0
        %1697 = vmatpush1.bf16.msra.mxu0 0
        %1698 = vmatprep.subr.bf16.mxu0 0
        %1699 = vmatpush1.bf16.msra.mxu0 0
        %1700 = vmatprep.subr.bf16.mxu0 0
        %1701 = vmatpush1.bf16.msra.mxu0 0
        %1702 = vmatprep.subr.bf16.mxu0 0
        %1703 = vmatpush1.bf16.msra.mxu0 0
        %1704 = vmatprep.subr.bf16.mxu0 0
        %1705 = vmatpush1.bf16.msra.mxu0 0
        %1706 = vmatprep.subr.bf16.mxu0 %v1684
        %1707 = vmatpush1.bf16.msra.mxu0 %v1683
        %1708 = vmatprep.subr.bf16.mxu0 0
        %1709 = vmatpush2.bf16.msra.mxu0 0
        %1710 = vmatprep.subr.bf16.mxu0 0
        %1711 = vmatpush2.bf16.msra.mxu0 0
        %1712 = vmatprep.subr.bf16.mxu0 0
        %1713 = vmatpush2.bf16.msra.mxu0 0
        %1714 = vmatprep.subr.bf16.mxu0 0
        %1715 = vmatpush2.bf16.msra.mxu0 0
        %1716 = vmatprep.subr.bf16.mxu0 0
        %1717 = vmatpush2.bf16.msra.mxu0 0
        %1718 = vmatprep.subr.bf16.mxu0 0
        %1719 = vmatpush2.bf16.msra.mxu0 0
        %1720 = vmatprep.subr.bf16.mxu0 0
        %1721 = vmatpush2.bf16.msra.mxu0 0
        %1722 = vmatprep.subr.bf16.mxu0 0
        %1723 = vmatpush2.bf16.msra.mxu0 0
        %1724 = vmatprep.mubr.bf16.mxu0 0
        %1725 = vmatmul.mubr.bf16.gmra.mxu0 %v1690
        %v1726 = vpop.f32.mrf.mxu0
        %v1727 = vadd.f32 0.0, %v1726
        %v1728 = vpop.f32.mrf.mxu0
        %v1729 = vadd.f32 0.0, %v1728
        %v1730 = vpop.f32.mrf.mxu0
        %v1731 = vadd.f32 0.0, %v1730
        %v1732 = vpop.f32.mrf.mxu0
        %v1733 = vadd.f32 0.0, %v1732
        %1734 = vdwg.mxu0
        %1735 = vmatprep.subr.bf16.mxu0 0
        %1736 = vmatpush1.bf16.msra.mxu0 0
        %1737 = vmatprep.subr.bf16.mxu0 0
        %1738 = vmatpush1.bf16.msra.mxu0 0
        %1739 = vmatprep.subr.bf16.mxu0 0
        %1740 = vmatpush1.bf16.msra.mxu0 0
        %1741 = vmatprep.subr.bf16.mxu0 0
        %1742 = vmatpush1.bf16.msra.mxu0 0
        %1743 = vmatprep.subr.bf16.mxu0 0
        %1744 = vmatpush1.bf16.msra.mxu0 0
        %1745 = vmatprep.subr.bf16.mxu0 0
        %1746 = vmatpush1.bf16.msra.mxu0 0
        %1747 = vmatprep.subr.bf16.mxu0 0
        %1748 = vmatpush1.bf16.msra.mxu0 0
        %1749 = vmatprep.subr.bf16.mxu0 0
        %1750 = vmatpush1.bf16.msra.mxu0 %v1685
        %1751 = vmatprep.subr.bf16.mxu0 0
        %1752 = vmatpush2.bf16.msra.mxu0 0
        %1753 = vmatprep.subr.bf16.mxu0 0
        %1754 = vmatpush2.bf16.msra.mxu0 0
        %1755 = vmatprep.subr.bf16.mxu0 0
        %1756 = vmatpush2.bf16.msra.mxu0 0
        %1757 = vmatprep.subr.bf16.mxu0 0
        %1758 = vmatpush2.bf16.msra.mxu0 0
        %1759 = vmatprep.subr.bf16.mxu0 0
        %1760 = vmatpush2.bf16.msra.mxu0 0
        %1761 = vmatprep.subr.bf16.mxu0 0
        %1762 = vmatpush2.bf16.msra.mxu0 0
        %1763 = vmatprep.subr.bf16.mxu0 0
        %1764 = vmatpush2.bf16.msra.mxu0 0
        %1765 = vmatprep.subr.bf16.mxu0 0
        %1766 = vmatpush2.bf16.msra.mxu0 0
        %1767 = vmatprep.mubr.bf16.mxu0 0
        %1768 = vmatmul.mubr.bf16.gmra.mxu0 %v1690
        %v1769 = vpop.f32.mrf.mxu0
        %v1770 = vadd.f32 0.0, %v1769
        %v1771 = vpop.f32.mrf.mxu0
        %v1772 = vpop.f32.mrf.mxu0
        %v1773 = vadd.f32 0.0, %v1772
        %v1774 = vpop.f32.mrf.mxu0
        %1775 = vdwg.mxu0
        %v1776 = vadd.f32 %v1618, %v1727
        %v1777 = vadd.f32 %v1620, %v1729
        %v1778 = vadd.f32 %v1661, %v1770
        %v1779 = vadd.f32 %v1622, %v1731
        %v1780 = vadd.f32 %v1624, %v1733
        %v1781 = vadd.f32 %v1664, %v1773
        %s1782 = scalar_lea.vmem %s4, 24
        %v1783 = vld [vmem:[%s1782] sm:$0xf]
        %v1784 = vld [vmem:[%s1782 + $0x4] sm:$0xf]
        %v1787 = vunpack.c.l.b16 %v1783
        %v1788 = vunpack.c.l.b16 %v1784
        %v1789 = vpack.c.b16 %v1788, %v1787
        %1790 = vrot.lane.b32.xlu0 %v1455, 110
        %v1791 = vpop.permute.xlu0 %1790
        %1792 = vrot.lane.b32.xlu0 %v1456, 110
        %v1793 = vpop.permute.xlu0 %1792
        %1794 = vrot.lane.b32.xlu0 %v1457, 110
        %v1795 = vpop.permute.xlu0 %1794
        %1796 = vrot.lane.b32.xlu0 %v1458, 110
        %v1797 = vpop.permute.xlu0 %1796
        %v1798 = vsel %vm639, %v1791, %v1793
        %v1799 = vsel %vm639, %v1793, %v1795
        %v1800 = vsel %vm639, %v1795, %v1797
        %v1805 = vsel %vm1487, %v1789, 0
        %1807 = vmatprep.subr.bf16.mxu0 0
        %1808 = vmatpush1.bf16.msra.mxu0 0
        %1809 = vmatprep.subr.bf16.mxu0 0
        %1810 = vmatpush1.bf16.msra.mxu0 0
        %1811 = vmatprep.subr.bf16.mxu0 0
        %1812 = vmatpush1.bf16.msra.mxu0 0
        %1813 = vmatprep.subr.bf16.mxu0 0
        %1814 = vmatpush1.bf16.msra.mxu0 0
        %1815 = vmatprep.subr.bf16.mxu0 0
        %1816 = vmatpush1.bf16.msra.mxu0 0
        %1817 = vmatprep.subr.bf16.mxu0 0
        %1818 = vmatpush1.bf16.msra.mxu0 0
        %1819 = vmatprep.subr.bf16.mxu0 0
        %1820 = vmatpush1.bf16.msra.mxu0 0
        %1821 = vmatprep.subr.bf16.mxu0 %v1799
        %1822 = vmatpush1.bf16.msra.mxu0 %v1798
        %1823 = vmatprep.subr.bf16.mxu0 0
        %1824 = vmatpush2.bf16.msra.mxu0 0
        %1825 = vmatprep.subr.bf16.mxu0 0
        %1826 = vmatpush2.bf16.msra.mxu0 0
        %1827 = vmatprep.subr.bf16.mxu0 0
        %1828 = vmatpush2.bf16.msra.mxu0 0
        %1829 = vmatprep.subr.bf16.mxu0 0
        %1830 = vmatpush2.bf16.msra.mxu0 0
        %1831 = vmatprep.subr.bf16.mxu0 0
        %1832 = vmatpush2.bf16.msra.mxu0 0
        %1833 = vmatprep.subr.bf16.mxu0 0
        %1834 = vmatpush2.bf16.msra.mxu0 0
        %1835 = vmatprep.subr.bf16.mxu0 0
        %1836 = vmatpush2.bf16.msra.mxu0 0
        %1837 = vmatprep.subr.bf16.mxu0 0
        %1838 = vmatpush2.bf16.msra.mxu0 0
        %1839 = vmatprep.mubr.bf16.mxu0 0
        %1840 = vmatmul.mubr.bf16.gmra.mxu0 %v1805
        %v1841 = vpop.f32.mrf.mxu0
        %v1842 = vadd.f32 0.0, %v1841
        %v1843 = vpop.f32.mrf.mxu0
        %v1844 = vadd.f32 0.0, %v1843
        %v1845 = vpop.f32.mrf.mxu0
        %v1846 = vadd.f32 0.0, %v1845
        %v1847 = vpop.f32.mrf.mxu0
        %v1848 = vadd.f32 0.0, %v1847
        %1849 = vdwg.mxu0
        %1850 = vmatprep.subr.bf16.mxu0 0
        %1851 = vmatpush1.bf16.msra.mxu0 0
        %1852 = vmatprep.subr.bf16.mxu0 0
        %1853 = vmatpush1.bf16.msra.mxu0 0
        %1854 = vmatprep.subr.bf16.mxu0 0
        %1855 = vmatpush1.bf16.msra.mxu0 0
        %1856 = vmatprep.subr.bf16.mxu0 0
        %1857 = vmatpush1.bf16.msra.mxu0 0
        %1858 = vmatprep.subr.bf16.mxu0 0
        %1859 = vmatpush1.bf16.msra.mxu0 0
        %1860 = vmatprep.subr.bf16.mxu0 0
        %1861 = vmatpush1.bf16.msra.mxu0 0
        %1862 = vmatprep.subr.bf16.mxu0 0
        %1863 = vmatpush1.bf16.msra.mxu0 0
        %1864 = vmatprep.subr.bf16.mxu0 0
        %1865 = vmatpush1.bf16.msra.mxu0 %v1800
        %1866 = vmatprep.subr.bf16.mxu0 0
        %1867 = vmatpush2.bf16.msra.mxu0 0
        %1868 = vmatprep.subr.bf16.mxu0 0
        %1869 = vmatpush2.bf16.msra.mxu0 0
        %1870 = vmatprep.subr.bf16.mxu0 0
        %1871 = vmatpush2.bf16.msra.mxu0 0
        %1872 = vmatprep.subr.bf16.mxu0 0
        %1873 = vmatpush2.bf16.msra.mxu0 0
        %1874 = vmatprep.subr.bf16.mxu0 0
        %1875 = vmatpush2.bf16.msra.mxu0 0
        %1876 = vmatprep.subr.bf16.mxu0 0
        %1877 = vmatpush2.bf16.msra.mxu0 0
        %1878 = vmatprep.subr.bf16.mxu0 0
        %1879 = vmatpush2.bf16.msra.mxu0 0
        %1880 = vmatprep.subr.bf16.mxu0 0
        %1881 = vmatpush2.bf16.msra.mxu0 0
        %1882 = vmatprep.mubr.bf16.mxu0 0
        %1883 = vmatmul.mubr.bf16.gmra.mxu0 %v1805
        %v1884 = vpop.f32.mrf.mxu0
        %v1885 = vadd.f32 0.0, %v1884
        %v1886 = vpop.f32.mrf.mxu0
        %v1887 = vpop.f32.mrf.mxu0
        %v1888 = vadd.f32 0.0, %v1887
        %v1889 = vpop.f32.mrf.mxu0
        %1890 = vdwg.mxu0
        %v1891 = vadd.f32 %v1776, %v1842
        %v1892 = vadd.f32 %v1777, %v1844
        %v1893 = vadd.f32 %v1778, %v1885
        %v1894 = vadd.f32 %v1779, %v1846
        %v1895 = vadd.f32 %v1780, %v1848
        %v1896 = vadd.f32 %v1781, %v1888
        %s1897 = scalar_lea.vmem %s4, 32
        %v1898 = vld [vmem:[%s1897] sm:$0xf]
        %v1899 = vld [vmem:[%s1897 + $0x4] sm:$0xf]
        %v1902 = vunpack.c.l.b16 %v1898
        %v1903 = vunpack.c.l.b16 %v1899
        %v1904 = vpack.c.b16 %v1903, %v1902
        %1905 = vrot.lane.b32.xlu0 %v1455, 109
        %v1906 = vpop.permute.xlu0 %1905
        %1907 = vrot.lane.b32.xlu0 %v1456, 109
        %v1908 = vpop.permute.xlu0 %1907
        %1909 = vrot.lane.b32.xlu0 %v1457, 109
        %v1910 = vpop.permute.xlu0 %1909
        %1911 = vrot.lane.b32.xlu0 %v1458, 109
        %v1912 = vpop.permute.xlu0 %1911
        %v1913 = vsel %vm768, %v1906, %v1908
        %v1914 = vsel %vm768, %v1908, %v1910
        %v1915 = vsel %vm768, %v1910, %v1912
        %v1920 = vsel %vm1487, %v1904, 0
        %1922 = vmatprep.subr.bf16.mxu0 0
        %1923 = vmatpush1.bf16.msra.mxu0 0
        %1924 = vmatprep.subr.bf16.mxu0 0
        %1925 = vmatpush1.bf16.msra.mxu0 0
        %1926 = vmatprep.subr.bf16.mxu0 0
        %1927 = vmatpush1.bf16.msra.mxu0 0
        %1928 = vmatprep.subr.bf16.mxu0 0
        %1929 = vmatpush1.bf16.msra.mxu0 0
        %1930 = vmatprep.subr.bf16.mxu0 0
        %1931 = vmatpush1.bf16.msra.mxu0 0
        %1932 = vmatprep.subr.bf16.mxu0 0
        %1933 = vmatpush1.bf16.msra.mxu0 0
        %1934 = vmatprep.subr.bf16.mxu0 0
        %1935 = vmatpush1.bf16.msra.mxu0 0
        %1936 = vmatprep.subr.bf16.mxu0 %v1914
        %1937 = vmatpush1.bf16.msra.mxu0 %v1913
        %1938 = vmatprep.subr.bf16.mxu0 0
        %1939 = vmatpush2.bf16.msra.mxu0 0
        %1940 = vmatprep.subr.bf16.mxu0 0
        %1941 = vmatpush2.bf16.msra.mxu0 0
        %1942 = vmatprep.subr.bf16.mxu0 0
        %1943 = vmatpush2.bf16.msra.mxu0 0
        %1944 = vmatprep.subr.bf16.mxu0 0
        %1945 = vmatpush2.bf16.msra.mxu0 0
        %1946 = vmatprep.subr.bf16.mxu0 0
        %1947 = vmatpush2.bf16.msra.mxu0 0
        %1948 = vmatprep.subr.bf16.mxu0 0
        %1949 = vmatpush2.bf16.msra.mxu0 0
        %1950 = vmatprep.subr.bf16.mxu0 0
        %1951 = vmatpush2.bf16.msra.mxu0 0
        %1952 = vmatprep.subr.bf16.mxu0 0
        %1953 = vmatpush2.bf16.msra.mxu0 0
        %1954 = vmatprep.mubr.bf16.mxu0 0
        %1955 = vmatmul.mubr.bf16.gmra.mxu0 %v1920
        %v1956 = vpop.f32.mrf.mxu0
        %v1957 = vadd.f32 0.0, %v1956
        %v1958 = vpop.f32.mrf.mxu0
        %v1959 = vadd.f32 0.0, %v1958
        %v1960 = vpop.f32.mrf.mxu0
        %v1961 = vadd.f32 0.0, %v1960
        %v1962 = vpop.f32.mrf.mxu0
        %v1963 = vadd.f32 0.0, %v1962
        %1964 = vdwg.mxu0
        %1965 = vmatprep.subr.bf16.mxu0 0
        %1966 = vmatpush1.bf16.msra.mxu0 0
        %1967 = vmatprep.subr.bf16.mxu0 0
        %1968 = vmatpush1.bf16.msra.mxu0 0
        %1969 = vmatprep.subr.bf16.mxu0 0
        %1970 = vmatpush1.bf16.msra.mxu0 0
        %1971 = vmatprep.subr.bf16.mxu0 0
        %1972 = vmatpush1.bf16.msra.mxu0 0
        %1973 = vmatprep.subr.bf16.mxu0 0
        %1974 = vmatpush1.bf16.msra.mxu0 0
        %1975 = vmatprep.subr.bf16.mxu0 0
        %1976 = vmatpush1.bf16.msra.mxu0 0
        %1977 = vmatprep.subr.bf16.mxu0 0
        %1978 = vmatpush1.bf16.msra.mxu0 0
        %1979 = vmatprep.subr.bf16.mxu0 0
        %1980 = vmatpush1.bf16.msra.mxu0 %v1915
        %1981 = vmatprep.subr.bf16.mxu0 0
        %1982 = vmatpush2.bf16.msra.mxu0 0
        %1983 = vmatprep.subr.bf16.mxu0 0
        %1984 = vmatpush2.bf16.msra.mxu0 0
        %1985 = vmatprep.subr.bf16.mxu0 0
        %1986 = vmatpush2.bf16.msra.mxu0 0
        %1987 = vmatprep.subr.bf16.mxu0 0
        %1988 = vmatpush2.bf16.msra.mxu0 0
        %1989 = vmatprep.subr.bf16.mxu0 0
        %1990 = vmatpush2.bf16.msra.mxu0 0
        %1991 = vmatprep.subr.bf16.mxu0 0
        %1992 = vmatpush2.bf16.msra.mxu0 0
        %1993 = vmatprep.subr.bf16.mxu0 0
        %1994 = vmatpush2.bf16.msra.mxu0 0
        %1995 = vmatprep.subr.bf16.mxu0 0
        %1996 = vmatpush2.bf16.msra.mxu0 0
        %1997 = vmatprep.mubr.bf16.mxu0 0
        %1998 = vmatmul.mubr.bf16.gmra.mxu0 %v1920
        %v1999 = vpop.f32.mrf.mxu0
        %v2000 = vadd.f32 0.0, %v1999
        %v2001 = vpop.f32.mrf.mxu0
        %v2002 = vpop.f32.mrf.mxu0
        %v2003 = vadd.f32 0.0, %v2002
        %v2004 = vpop.f32.mrf.mxu0
        %2005 = vdwg.mxu0
        %v2006 = vadd.f32 %v1891, %v1957
        %v2007 = vadd.f32 %v1892, %v1959
        %v2008 = vadd.f32 %v1893, %v2000
        %v2009 = vadd.f32 %v1894, %v1961
        %v2010 = vadd.f32 %v1895, %v1963
        %v2011 = vadd.f32 %v1896, %v2003
        %s2012 = scalar_lea.vmem %s4, 40
        %v2013 = vld [vmem:[%s2012] sm:$0xf]
        %v2014 = vld [vmem:[%s2012 + $0x4] sm:$0xf]
        %v2017 = vunpack.c.l.b16 %v2013
        %v2018 = vunpack.c.l.b16 %v2014
        %v2019 = vpack.c.b16 %v2018, %v2017
        %2020 = vrot.lane.b32.xlu0 %v1455, 108
        %v2021 = vpop.permute.xlu0 %2020
        %2022 = vrot.lane.b32.xlu0 %v1456, 108
        %v2023 = vpop.permute.xlu0 %2022
        %2024 = vrot.lane.b32.xlu0 %v1457, 108
        %v2025 = vpop.permute.xlu0 %2024
        %2026 = vrot.lane.b32.xlu0 %v1458, 108
        %v2027 = vpop.permute.xlu0 %2026
        %v2028 = vsel %vm897, %v2021, %v2023
        %v2029 = vsel %vm897, %v2023, %v2025
        %v2030 = vsel %vm897, %v2025, %v2027
        %v2035 = vsel %vm1487, %v2019, 0
        %2037 = vmatprep.subr.bf16.mxu0 0
        %2038 = vmatpush1.bf16.msra.mxu0 0
        %2039 = vmatprep.subr.bf16.mxu0 0
        %2040 = vmatpush1.bf16.msra.mxu0 0
        %2041 = vmatprep.subr.bf16.mxu0 0
        %2042 = vmatpush1.bf16.msra.mxu0 0
        %2043 = vmatprep.subr.bf16.mxu0 0
        %2044 = vmatpush1.bf16.msra.mxu0 0
        %2045 = vmatprep.subr.bf16.mxu0 0
        %2046 = vmatpush1.bf16.msra.mxu0 0
        %2047 = vmatprep.subr.bf16.mxu0 0
        %2048 = vmatpush1.bf16.msra.mxu0 0
        %2049 = vmatprep.subr.bf16.mxu0 0
        %2050 = vmatpush1.bf16.msra.mxu0 0
        %2051 = vmatprep.subr.bf16.mxu0 %v2029
        %2052 = vmatpush1.bf16.msra.mxu0 %v2028
        %2053 = vmatprep.subr.bf16.mxu0 0
        %2054 = vmatpush2.bf16.msra.mxu0 0
        %2055 = vmatprep.subr.bf16.mxu0 0
        %2056 = vmatpush2.bf16.msra.mxu0 0
        %2057 = vmatprep.subr.bf16.mxu0 0
        %2058 = vmatpush2.bf16.msra.mxu0 0
        %2059 = vmatprep.subr.bf16.mxu0 0
        %2060 = vmatpush2.bf16.msra.mxu0 0
        %2061 = vmatprep.subr.bf16.mxu0 0
        %2062 = vmatpush2.bf16.msra.mxu0 0
        %2063 = vmatprep.subr.bf16.mxu0 0
        %2064 = vmatpush2.bf16.msra.mxu0 0
        %2065 = vmatprep.subr.bf16.mxu0 0
        %2066 = vmatpush2.bf16.msra.mxu0 0
        %2067 = vmatprep.subr.bf16.mxu0 0
        %2068 = vmatpush2.bf16.msra.mxu0 0
        %2069 = vmatprep.mubr.bf16.mxu0 0
        %2070 = vmatmul.mubr.bf16.gmra.mxu0 %v2035
        %v2071 = vpop.f32.mrf.mxu0
        %v2072 = vadd.f32 0.0, %v2071
        %v2073 = vpop.f32.mrf.mxu0
        %v2074 = vadd.f32 0.0, %v2073
        %v2075 = vpop.f32.mrf.mxu0
        %v2076 = vadd.f32 0.0, %v2075
        %v2077 = vpop.f32.mrf.mxu0
        %v2078 = vadd.f32 0.0, %v2077
        %2079 = vdwg.mxu0
        %2080 = vmatprep.subr.bf16.mxu0 0
        %2081 = vmatpush1.bf16.msra.mxu0 0
        %2082 = vmatprep.subr.bf16.mxu0 0
        %2083 = vmatpush1.bf16.msra.mxu0 0
        %2084 = vmatprep.subr.bf16.mxu0 0
        %2085 = vmatpush1.bf16.msra.mxu0 0
        %2086 = vmatprep.subr.bf16.mxu0 0
        %2087 = vmatpush1.bf16.msra.mxu0 0
        %2088 = vmatprep.subr.bf16.mxu0 0
        %2089 = vmatpush1.bf16.msra.mxu0 0
        %2090 = vmatprep.subr.bf16.mxu0 0
        %2091 = vmatpush1.bf16.msra.mxu0 0
        %2092 = vmatprep.subr.bf16.mxu0 0
        %2093 = vmatpush1.bf16.msra.mxu0 0
        %2094 = vmatprep.subr.bf16.mxu0 0
        %2095 = vmatpush1.bf16.msra.mxu0 %v2030
        %2096 = vmatprep.subr.bf16.mxu0 0
        %2097 = vmatpush2.bf16.msra.mxu0 0
        %2098 = vmatprep.subr.bf16.mxu0 0
        %2099 = vmatpush2.bf16.msra.mxu0 0
        %2100 = vmatprep.subr.bf16.mxu0 0
        %2101 = vmatpush2.bf16.msra.mxu0 0
        %2102 = vmatprep.subr.bf16.mxu0 0
        %2103 = vmatpush2.bf16.msra.mxu0 0
        %2104 = vmatprep.subr.bf16.mxu0 0
        %2105 = vmatpush2.bf16.msra.mxu0 0
        %2106 = vmatprep.subr.bf16.mxu0 0
        %2107 = vmatpush2.bf16.msra.mxu0 0
        %2108 = vmatprep.subr.bf16.mxu0 0
        %2109 = vmatpush2.bf16.msra.mxu0 0
        %2110 = vmatprep.subr.bf16.mxu0 0
        %2111 = vmatpush2.bf16.msra.mxu0 0
        %2112 = vmatprep.mubr.bf16.mxu0 0
        %2113 = vmatmul.mubr.bf16.gmra.mxu0 %v2035
        %v2114 = vpop.f32.mrf.mxu0
        %v2115 = vadd.f32 0.0, %v2114
        %v2116 = vpop.f32.mrf.mxu0
        %v2117 = vpop.f32.mrf.mxu0
        %v2118 = vadd.f32 0.0, %v2117
        %v2119 = vpop.f32.mrf.mxu0
        %2120 = vdwg.mxu0
        %v2121 = vadd.f32 %v2006, %v2072
        %v2122 = vadd.f32 %v2007, %v2074
        %v2123 = vadd.f32 %v2008, %v2115
        %v2124 = vadd.f32 %v2009, %v2076
        %v2125 = vadd.f32 %v2010, %v2078
        %v2126 = vadd.f32 %v2011, %v2118
        %s2127 = scalar_lea.vmem %s4, 48
        %v2128 = vld [vmem:[%s2127] sm:$0xf]
        %v2129 = vld [vmem:[%s2127 + $0x4] sm:$0xf]
        %v2132 = vunpack.c.l.b16 %v2128
        %v2133 = vunpack.c.l.b16 %v2129
        %v2134 = vpack.c.b16 %v2133, %v2132
        %2135 = vrot.lane.b32.xlu0 %v1455, 92
        %v2136 = vpop.permute.xlu0 %2135
        %2137 = vrot.lane.b32.xlu0 %v1456, 92
        %v2138 = vpop.permute.xlu0 %2137
        %2139 = vrot.lane.b32.xlu0 %v1457, 92
        %v2140 = vpop.permute.xlu0 %2139
        %2141 = vrot.lane.b32.xlu0 %v1458, 92
        %v2142 = vpop.permute.xlu0 %2141
        %v2143 = vsel %vm1026, %v2136, %v2138
        %v2144 = vsel %vm1026, %v2138, %v2140
        %v2145 = vsel %vm1026, %v2140, %v2142
        %v2150 = vsel %vm1487, %v2134, 0
        %2152 = vmatprep.subr.bf16.mxu0 0
        %2153 = vmatpush1.bf16.msra.mxu0 0
        %2154 = vmatprep.subr.bf16.mxu0 0
        %2155 = vmatpush1.bf16.msra.mxu0 0
        %2156 = vmatprep.subr.bf16.mxu0 0
        %2157 = vmatpush1.bf16.msra.mxu0 0
        %2158 = vmatprep.subr.bf16.mxu0 0
        %2159 = vmatpush1.bf16.msra.mxu0 0
        %2160 = vmatprep.subr.bf16.mxu0 0
        %2161 = vmatpush1.bf16.msra.mxu0 0
        %2162 = vmatprep.subr.bf16.mxu0 0
        %2163 = vmatpush1.bf16.msra.mxu0 0
        %2164 = vmatprep.subr.bf16.mxu0 0
        %2165 = vmatpush1.bf16.msra.mxu0 0
        %2166 = vmatprep.subr.bf16.mxu0 %v2144
        %2167 = vmatpush1.bf16.msra.mxu0 %v2143
        %2168 = vmatprep.subr.bf16.mxu0 0
        %2169 = vmatpush2.bf16.msra.mxu0 0
        %2170 = vmatprep.subr.bf16.mxu0 0
        %2171 = vmatpush2.bf16.msra.mxu0 0
        %2172 = vmatprep.subr.bf16.mxu0 0
        %2173 = vmatpush2.bf16.msra.mxu0 0
        %2174 = vmatprep.subr.bf16.mxu0 0
        %2175 = vmatpush2.bf16.msra.mxu0 0
        %2176 = vmatprep.subr.bf16.mxu0 0
        %2177 = vmatpush2.bf16.msra.mxu0 0
        %2178 = vmatprep.subr.bf16.mxu0 0
        %2179 = vmatpush2.bf16.msra.mxu0 0
        %2180 = vmatprep.subr.bf16.mxu0 0
        %2181 = vmatpush2.bf16.msra.mxu0 0
        %2182 = vmatprep.subr.bf16.mxu0 0
        %2183 = vmatpush2.bf16.msra.mxu0 0
        %2184 = vmatprep.mubr.bf16.mxu0 0
        %2185 = vmatmul.mubr.bf16.gmra.mxu0 %v2150
        %v2186 = vpop.f32.mrf.mxu0
        %v2187 = vadd.f32 0.0, %v2186
        %v2188 = vpop.f32.mrf.mxu0
        %v2189 = vadd.f32 0.0, %v2188
        %v2190 = vpop.f32.mrf.mxu0
        %v2191 = vadd.f32 0.0, %v2190
        %v2192 = vpop.f32.mrf.mxu0
        %v2193 = vadd.f32 0.0, %v2192
        %2194 = vdwg.mxu0
        %2195 = vmatprep.subr.bf16.mxu0 0
        %2196 = vmatpush1.bf16.msra.mxu0 0
        %2197 = vmatprep.subr.bf16.mxu0 0
        %2198 = vmatpush1.bf16.msra.mxu0 0
        %2199 = vmatprep.subr.bf16.mxu0 0
        %2200 = vmatpush1.bf16.msra.mxu0 0
        %2201 = vmatprep.subr.bf16.mxu0 0
        %2202 = vmatpush1.bf16.msra.mxu0 0
        %2203 = vmatprep.subr.bf16.mxu0 0
        %2204 = vmatpush1.bf16.msra.mxu0 0
        %2205 = vmatprep.subr.bf16.mxu0 0
        %2206 = vmatpush1.bf16.msra.mxu0 0
        %2207 = vmatprep.subr.bf16.mxu0 0
        %2208 = vmatpush1.bf16.msra.mxu0 0
        %2209 = vmatprep.subr.bf16.mxu0 0
        %2210 = vmatpush1.bf16.msra.mxu0 %v2145
        %2211 = vmatprep.subr.bf16.mxu0 0
        %2212 = vmatpush2.bf16.msra.mxu0 0
        %2213 = vmatprep.subr.bf16.mxu0 0
        %2214 = vmatpush2.bf16.msra.mxu0 0
        %2215 = vmatprep.subr.bf16.mxu0 0
        %2216 = vmatpush2.bf16.msra.mxu0 0
        %2217 = vmatprep.subr.bf16.mxu0 0
        %2218 = vmatpush2.bf16.msra.mxu0 0
        %2219 = vmatprep.subr.bf16.mxu0 0
        %2220 = vmatpush2.bf16.msra.mxu0 0
        %2221 = vmatprep.subr.bf16.mxu0 0
        %2222 = vmatpush2.bf16.msra.mxu0 0
        %2223 = vmatprep.subr.bf16.mxu0 0
        %2224 = vmatpush2.bf16.msra.mxu0 0
        %2225 = vmatprep.subr.bf16.mxu0 0
        %2226 = vmatpush2.bf16.msra.mxu0 0
        %2227 = vmatprep.mubr.bf16.mxu0 0
        %2228 = vmatmul.mubr.bf16.gmra.mxu0 %v2150
        %v2229 = vpop.f32.mrf.mxu0
        %v2230 = vadd.f32 0.0, %v2229
        %v2231 = vpop.f32.mrf.mxu0
        %v2232 = vpop.f32.mrf.mxu0
        %v2233 = vadd.f32 0.0, %v2232
        %v2234 = vpop.f32.mrf.mxu0
        %2235 = vdwg.mxu0
        %v2236 = vadd.f32 %v2121, %v2187
        %v2237 = vadd.f32 %v2122, %v2189
        %v2238 = vadd.f32 %v2123, %v2230
        %v2239 = vadd.f32 %v2124, %v2191
        %v2240 = vadd.f32 %v2125, %v2193
        %v2241 = vadd.f32 %v2126, %v2233
        %s2242 = scalar_lea.vmem %s4, 56
        %v2243 = vld [vmem:[%s2242] sm:$0xf]
        %v2244 = vld [vmem:[%s2242 + $0x4] sm:$0xf]
        %v2247 = vunpack.c.l.b16 %v2243
        %v2248 = vunpack.c.l.b16 %v2244
        %v2249 = vpack.c.b16 %v2248, %v2247
        %2250 = vrot.lane.b32.xlu0 %v1455, 91
        %v2251 = vpop.permute.xlu0 %2250
        %2252 = vrot.lane.b32.xlu0 %v1456, 91
        %v2253 = vpop.permute.xlu0 %2252
        %2254 = vrot.lane.b32.xlu0 %v1457, 91
        %v2255 = vpop.permute.xlu0 %2254
        %2256 = vrot.lane.b32.xlu0 %v1458, 91
        %v2257 = vpop.permute.xlu0 %2256
        %v2258 = vsel %vm1155, %v2251, %v2253
        %v2259 = vsel %vm1155, %v2253, %v2255
        %v2260 = vsel %vm1155, %v2255, %v2257
        %v2265 = vsel %vm1487, %v2249, 0
        %2267 = vmatprep.subr.bf16.mxu0 0
        %2268 = vmatpush1.bf16.msra.mxu0 0
        %2269 = vmatprep.subr.bf16.mxu0 0
        %2270 = vmatpush1.bf16.msra.mxu0 0
        %2271 = vmatprep.subr.bf16.mxu0 0
        %2272 = vmatpush1.bf16.msra.mxu0 0
        %2273 = vmatprep.subr.bf16.mxu0 0
        %2274 = vmatpush1.bf16.msra.mxu0 0
        %2275 = vmatprep.subr.bf16.mxu0 0
        %2276 = vmatpush1.bf16.msra.mxu0 0
        %2277 = vmatprep.subr.bf16.mxu0 0
        %2278 = vmatpush1.bf16.msra.mxu0 0
        %2279 = vmatprep.subr.bf16.mxu0 0
        %2280 = vmatpush1.bf16.msra.mxu0 0
        %2281 = vmatprep.subr.bf16.mxu0 %v2259
        %2282 = vmatpush1.bf16.msra.mxu0 %v2258
        %2283 = vmatprep.subr.bf16.mxu0 0
        %2284 = vmatpush2.bf16.msra.mxu0 0
        %2285 = vmatprep.subr.bf16.mxu0 0
        %2286 = vmatpush2.bf16.msra.mxu0 0
        %2287 = vmatprep.subr.bf16.mxu0 0
        %2288 = vmatpush2.bf16.msra.mxu0 0
        %2289 = vmatprep.subr.bf16.mxu0 0
        %2290 = vmatpush2.bf16.msra.mxu0 0
        %2291 = vmatprep.subr.bf16.mxu0 0
        %2292 = vmatpush2.bf16.msra.mxu0 0
        %2293 = vmatprep.subr.bf16.mxu0 0
        %2294 = vmatpush2.bf16.msra.mxu0 0
        %2295 = vmatprep.subr.bf16.mxu0 0
        %2296 = vmatpush2.bf16.msra.mxu0 0
        %2297 = vmatprep.subr.bf16.mxu0 0
        %2298 = vmatpush2.bf16.msra.mxu0 0
        %2299 = vmatprep.mubr.bf16.mxu0 0
        %2300 = vmatmul.mubr.bf16.gmra.mxu0 %v2265
        %v2301 = vpop.f32.mrf.mxu0
        %v2302 = vadd.f32 0.0, %v2301
        %v2303 = vpop.f32.mrf.mxu0
        %v2304 = vadd.f32 0.0, %v2303
        %v2305 = vpop.f32.mrf.mxu0
        %v2306 = vadd.f32 0.0, %v2305
        %v2307 = vpop.f32.mrf.mxu0
        %v2308 = vadd.f32 0.0, %v2307
        %2309 = vdwg.mxu0
        %2310 = vmatprep.subr.bf16.mxu0 0
        %2311 = vmatpush1.bf16.msra.mxu0 0
        %2312 = vmatprep.subr.bf16.mxu0 0
        %2313 = vmatpush1.bf16.msra.mxu0 0
        %2314 = vmatprep.subr.bf16.mxu0 0
        %2315 = vmatpush1.bf16.msra.mxu0 0
        %2316 = vmatprep.subr.bf16.mxu0 0
        %2317 = vmatpush1.bf16.msra.mxu0 0
        %2318 = vmatprep.subr.bf16.mxu0 0
        %2319 = vmatpush1.bf16.msra.mxu0 0
        %2320 = vmatprep.subr.bf16.mxu0 0
        %2321 = vmatpush1.bf16.msra.mxu0 0
        %2322 = vmatprep.subr.bf16.mxu0 0
        %2323 = vmatpush1.bf16.msra.mxu0 0
        %2324 = vmatprep.subr.bf16.mxu0 0
        %2325 = vmatpush1.bf16.msra.mxu0 %v2260
        %2326 = vmatprep.subr.bf16.mxu0 0
        %2327 = vmatpush2.bf16.msra.mxu0 0
        %2328 = vmatprep.subr.bf16.mxu0 0
        %2329 = vmatpush2.bf16.msra.mxu0 0
        %2330 = vmatprep.subr.bf16.mxu0 0
        %2331 = vmatpush2.bf16.msra.mxu0 0
        %2332 = vmatprep.subr.bf16.mxu0 0
        %2333 = vmatpush2.bf16.msra.mxu0 0
        %2334 = vmatprep.subr.bf16.mxu0 0
        %2335 = vmatpush2.bf16.msra.mxu0 0
        %2336 = vmatprep.subr.bf16.mxu0 0
        %2337 = vmatpush2.bf16.msra.mxu0 0
        %2338 = vmatprep.subr.bf16.mxu0 0
        %2339 = vmatpush2.bf16.msra.mxu0 0
        %2340 = vmatprep.subr.bf16.mxu0 0
        %2341 = vmatpush2.bf16.msra.mxu0 0
        %2342 = vmatprep.mubr.bf16.mxu0 0
        %2343 = vmatmul.mubr.bf16.gmra.mxu0 %v2265
        %v2344 = vpop.f32.mrf.mxu0
        %v2345 = vadd.f32 0.0, %v2344
        %v2346 = vpop.f32.mrf.mxu0
        %v2347 = vpop.f32.mrf.mxu0
        %v2348 = vadd.f32 0.0, %v2347
        %v2349 = vpop.f32.mrf.mxu0
        %2350 = vdwg.mxu0
        %v2351 = vadd.f32 %v2236, %v2302
        %v2352 = vadd.f32 %v2237, %v2304
        %v2353 = vadd.f32 %v2238, %v2345
        %v2354 = vadd.f32 %v2239, %v2306
        %v2355 = vadd.f32 %v2240, %v2308
        %v2356 = vadd.f32 %v2241, %v2348
        %s2357 = scalar_lea.vmem %s4, 64
        %v2358 = vld [vmem:[%s2357] sm:$0xf]
        %v2359 = vld [vmem:[%s2357 + $0x4] sm:$0xf]
        %v2362 = vunpack.c.l.b16 %v2358
        %v2363 = vunpack.c.l.b16 %v2359
        %v2364 = vpack.c.b16 %v2363, %v2362
        %2365 = vrot.lane.b32.xlu0 %v1455, 90
        %v2366 = vpop.permute.xlu0 %2365
        %2367 = vrot.lane.b32.xlu0 %v1456, 90
        %v2368 = vpop.permute.xlu0 %2367
        %2369 = vrot.lane.b32.xlu0 %v1457, 90
        %v2370 = vpop.permute.xlu0 %2369
        %2371 = vrot.lane.b32.xlu0 %v1458, 90
        %v2372 = vpop.permute.xlu0 %2371
        %v2373 = vsel %vm1284, %v2366, %v2368
        %v2374 = vsel %vm1284, %v2368, %v2370
        %v2375 = vsel %vm1284, %v2370, %v2372
        %v2380 = vsel %vm1487, %v2364, 0
        %2382 = vmatprep.subr.bf16.mxu0 0
        %2383 = vmatpush1.bf16.msra.mxu0 0
        %2384 = vmatprep.subr.bf16.mxu0 0
        %2385 = vmatpush1.bf16.msra.mxu0 0
        %2386 = vmatprep.subr.bf16.mxu0 0
        %2387 = vmatpush1.bf16.msra.mxu0 0
        %2388 = vmatprep.subr.bf16.mxu0 0
        %2389 = vmatpush1.bf16.msra.mxu0 0
        %2390 = vmatprep.subr.bf16.mxu0 0
        %2391 = vmatpush1.bf16.msra.mxu0 0
        %2392 = vmatprep.subr.bf16.mxu0 0
        %2393 = vmatpush1.bf16.msra.mxu0 0
        %2394 = vmatprep.subr.bf16.mxu0 0
        %2395 = vmatpush1.bf16.msra.mxu0 0
        %2396 = vmatprep.subr.bf16.mxu0 %v2374
        %2397 = vmatpush1.bf16.msra.mxu0 %v2373
        %2398 = vmatprep.subr.bf16.mxu0 0
        %2399 = vmatpush2.bf16.msra.mxu0 0
        %2400 = vmatprep.subr.bf16.mxu0 0
        %2401 = vmatpush2.bf16.msra.mxu0 0
        %2402 = vmatprep.subr.bf16.mxu0 0
        %2403 = vmatpush2.bf16.msra.mxu0 0
        %2404 = vmatprep.subr.bf16.mxu0 0
        %2405 = vmatpush2.bf16.msra.mxu0 0
        %2406 = vmatprep.subr.bf16.mxu0 0
        %2407 = vmatpush2.bf16.msra.mxu0 0
        %2408 = vmatprep.subr.bf16.mxu0 0
        %2409 = vmatpush2.bf16.msra.mxu0 0
        %2410 = vmatprep.subr.bf16.mxu0 0
        %2411 = vmatpush2.bf16.msra.mxu0 0
        %2412 = vmatprep.subr.bf16.mxu0 0
        %2413 = vmatpush2.bf16.msra.mxu0 0
        %2414 = vmatprep.mubr.bf16.mxu0 0
        %2415 = vmatmul.mubr.bf16.gmra.mxu0 %v2380
        %v2416 = vpop.f32.mrf.mxu0
        %v2417 = vadd.f32 0.0, %v2416
        %v2418 = vpop.f32.mrf.mxu0
        %v2419 = vadd.f32 0.0, %v2418
        %v2420 = vpop.f32.mrf.mxu0
        %v2421 = vadd.f32 0.0, %v2420
        %v2422 = vpop.f32.mrf.mxu0
        %v2423 = vadd.f32 0.0, %v2422
        %2424 = vdwg.mxu0
        %2425 = vmatprep.subr.bf16.mxu0 0
        %2426 = vmatpush1.bf16.msra.mxu0 0
        %2427 = vmatprep.subr.bf16.mxu0 0
        %2428 = vmatpush1.bf16.msra.mxu0 0
        %2429 = vmatprep.subr.bf16.mxu0 0
        %2430 = vmatpush1.bf16.msra.mxu0 0
        %2431 = vmatprep.subr.bf16.mxu0 0
        %2432 = vmatpush1.bf16.msra.mxu0 0
        %2433 = vmatprep.subr.bf16.mxu0 0
        %2434 = vmatpush1.bf16.msra.mxu0 0
        %2435 = vmatprep.subr.bf16.mxu0 0
        %2436 = vmatpush1.bf16.msra.mxu0 0
        %2437 = vmatprep.subr.bf16.mxu0 0
        %2438 = vmatpush1.bf16.msra.mxu0 0
        %2439 = vmatprep.subr.bf16.mxu0 0
        %2440 = vmatpush1.bf16.msra.mxu0 %v2375
        %2441 = vmatprep.subr.bf16.mxu0 0
        %2442 = vmatpush2.bf16.msra.mxu0 0
        %2443 = vmatprep.subr.bf16.mxu0 0
        %2444 = vmatpush2.bf16.msra.mxu0 0
        %2445 = vmatprep.subr.bf16.mxu0 0
        %2446 = vmatpush2.bf16.msra.mxu0 0
        %2447 = vmatprep.subr.bf16.mxu0 0
        %2448 = vmatpush2.bf16.msra.mxu0 0
        %2449 = vmatprep.subr.bf16.mxu0 0
        %2450 = vmatpush2.bf16.msra.mxu0 0
        %2451 = vmatprep.subr.bf16.mxu0 0
        %2452 = vmatpush2.bf16.msra.mxu0 0
        %2453 = vmatprep.subr.bf16.mxu0 0
        %2454 = vmatpush2.bf16.msra.mxu0 0
        %2455 = vmatprep.subr.bf16.mxu0 0
        %2456 = vmatpush2.bf16.msra.mxu0 0
        %2457 = vmatprep.mubr.bf16.mxu0 0
        %2458 = vmatmul.mubr.bf16.gmra.mxu0 %v2380
        %v2459 = vpop.f32.mrf.mxu0
        %v2460 = vadd.f32 0.0, %v2459
        %v2461 = vpop.f32.mrf.mxu0
        %v2462 = vpop.f32.mrf.mxu0
        %v2463 = vadd.f32 0.0, %v2462
        %v2464 = vpop.f32.mrf.mxu0
        %2465 = vdwg.mxu0
        %v2466 = vadd.f32 %v2351, %v2417
        %v2467 = vadd.f32 %v2352, %v2419
        %v2468 = vadd.f32 %v2353, %v2460
        %v2469 = vadd.f32 %v2354, %v2421
        %v2470 = vadd.f32 %v2355, %v2423
        %v2471 = vadd.f32 %v2356, %v2463
        %v2472 = vld [vmem:[%s5] sm:$0xff]
        %v2473 = vld [vmem:[%s5 + $0x8] sm:$0xff]
        %2475 = vset.pattern.permute.xlu0 0
        %2476 = vperm.xlu0 %2475, %v2472
        %v2477 = vpop.permute.xlu0 %2476
        %2480 = vset.pattern.permute.xlu0 0
        %2481 = vperm.xlu0 %2480, %v2473
        %v2482 = vpop.permute.xlu0 %2481
        %v2484 = vadd.f32 %v2466, %v2477
        %v2485 = vadd.f32 %v2467, %v2477
        %v2486 = vadd.f32 %v2468, %v2477
        %v2487 = vadd.f32 %v2469, %v2482
        %v2488 = vadd.f32 %v2470, %v2482
        %v2489 = vadd.f32 %v2471, %v2482
        %v2490 = vmax.f32 %v2484, 0.0
        %v2491 = vmax.f32 %v2485, 0.0
        %v2492 = vmax.f32 %v2486, 0.0
        %v2493 = vmax.f32 %v2487, 0.0
        %v2494 = vmax.f32 %v2488, 0.0
        %v2495 = vmax.f32 %v2489, 0.0
        %2496 = vst [vmem:[%s244] sm:$0xff] %v2490
        %2497 = vst [vmem:[%s244 + $0x8] sm:$0xff] %v2491
        %2498 = vst [vmem:[%s244 + $0x10] sm:$0xff] %v2492
        %2499 = vst [vmem:[%s244 + $0x18] sm:$0xff] %v2493
        %2500 = vst [vmem:[%s244 + $0x20] sm:$0xff] %v2494
        %2501 = vst [vmem:[%s244 + $0x28] sm:$0xff] %v2495
        %s2502 = sand.u32 %s159, 1
        %s2503 = scalar_lea.sflag [#allocation3], %s2502
        %s2504 = sand.u32 %s159, 1
        %s2505 = smul.addr %s2504, 48
        %s2506 = scalar_lea.vmem [#allocation2], %s2505
        // Predicated region
        $region45: #{tpu_custom_call.1} parent=43 // pred_check
          %p2507 = pneg %p169
        $region46: #{tpu_custom_call.1} parent=43 // pred_check_branch
          %2509 = sbr.rel (%p2507) target = $region48
        $region47: #{tpu_custom_call.1} parent=43 // pred_region
          %s2511 = ssub.s32 768, 768
          %2512 = vsyncadd %s2503, %s2511
          %s2513 = smul.addr %s20, 6
          %s2514 = smul.addr %s2513, 128
          %s2515 = scalar_lea.hbm %s6, %s2514
          %s2516 = sshll.u32 %s2506, 4
          %s2517 = int_to_ptr.vmem [resolvable:$true] %s2516
          %2522 = dma.vmem_to_hbm [thread:$0]  %s2517, 768, %s2515, %s2503, 384, 384, 24
        $region48: #{tpu_custom_call.1} parent=43 // pred_fallthru
          _
      $region44: #{tpu_custom_call.1} parent=5 // pred_fallthru
        _
      %p2523 = scmp.le.s32.totalorder 2, %s15
      // Predicated region
      $region49: #{tpu_custom_call.1} parent=5 // pred_check
        %p2524 = pneg %p2523
      $region50: #{tpu_custom_call.1} parent=5 // pred_check_branch
        %2526 = sbr.rel (%p2524) target = $region52
      $region51: #{tpu_custom_call.1} parent=5 // pred_region
        %s2527 = ssub.s32 %s15, 2
        // Predicated region
        $region53: #{tpu_custom_call.1} parent=51 // pred_check
          %p2528 = pneg %p175
        $region54: #{tpu_custom_call.1} parent=51 // pred_check_branch
          %2530 = sbr.rel (%p2528) target = $region56
        $region55: #{tpu_custom_call.1} parent=51 // pred_region
          %s2531 = sand.u32 %s160, 1
          %s2532 = scalar_lea.sflag [#allocation3], %s2531
          %s2533 = sand.u32 %s160, 1
          %s2534 = smul.addr %s2533, 48
          %s2535 = scalar_lea.vmem [#allocation2], %s2534
          %2536 = dma.done %s2532, 768
        $region56: #{tpu_custom_call.1} parent=51 // pred_fallthru
          _
      $region52: #{tpu_custom_call.1} parent=5 // pred_fallthru
        _
    $region6: #{tpu_custom_call.1} parent=1 // loop_footer
      %s19 = sadd.s32 1, %s15
    $region7: #{tpu_custom_call.1} parent=1 // loop_footer_branch
      %14 = sbr.rel target = $region3
    $region8: #{tpu_custom_call.1} parent=1 // loop_exit
      _
    %2537 = vsyncpa [#allocation3], 1
    %s2538 = scalar_lea.sflag [#allocation3], 1
    %2539 = vsyncpa %s2538, 1

</llo_original>
